<compile_context>
chip_gen: v5e
topology: v5e:2x2
jax: 0.10.0
libtpu: 0.0.40
codegen_flags: <defaults>
</compile_context>

<pallas_src>
import functools

import numpy as np
import jax
import jax.numpy as jnp
from jax import lax
from jax.experimental import pallas as pl
from jax.experimental.pallas import tpu as pltpu


# ----------------------------------------------------------------------------
# Fused kernel. Blocks are (G, num_heads, D, N): channels on sublanes,
# window positions (N = H_sp*W_sp) on lanes. wm is the mask-folded LePE tap
# weights (9, num_heads, D, N) in f32; b is the depthwise-conv bias
# (num_heads, D, 1) in f32.
# ----------------------------------------------------------------------------
def _fused_lepe_attn_kernel(q_ref, k_ref, v_ref, wm_ref, b_ref, o_ref, *,
                            W_sp, scale):
    G, nh, D, N = q_ref.shape
    GH = G * nh

    # ---- LePE depthwise 3x3 conv: 8 lane-rolls of v (XLU slot) + 9 FMAs with
    # mask-folded tap weights; accumulate in f32.
    v_f = v_ref[...].astype(jnp.float32)                       # (G, nh, D, N)
    lepe = v_f * wm_ref[4]                                     # center tap
    for ky in range(3):
        for kx in range(3):
            dy, dx = ky - 1, kx - 1
            if dy == 0 and dx == 0:
                continue
            off = dy * W_sp + dx
            tap = pltpu.roll(v_f, shift=(-off) % N, axis=3)    # lane rotate
            lepe = lepe + tap * wm_ref[ky * 3 + kx]

    # ---- Attention: bf16 MXU operands, f32 accumulation & softmax stats.
    # (G, nh, D, N) -> (G*nh, D, N) merges only leading (untiled) dims.
    qh = (q_ref[...] * scale).reshape(GH, D, N)                # bf16
    kh = k_ref[...].reshape(GH, D, N)                          # bf16
    vh = v_ref[...].reshape(GH, D, N)                          # bf16

    # Transposed scores: keys on sublanes, queries on lanes -> softmax stats
    # reduce over sublanes and broadcast directly onto the (D, Nq) output.
    s = lax.dot_general(kh, qh, (((1,), (1,)), ((0,), (0,))),
                        preferred_element_type=jnp.float32)    # (GH, Nk, Nq)
    m = jnp.max(s, axis=1, keepdims=True)                      # (GH, 1, Nq)
    # TODO(synk): attn_drop / proj_drop are nn.Dropout(0.0) -> identity; not emitted.
    p = jnp.exp(s - m)             # f32 exp (portable; bf16 exp is v6e/v7x-only win)
    denom = jnp.sum(p, axis=1, keepdims=True)                  # (GH, 1, Nq)
    o_t = lax.dot_general(vh, p.astype(jnp.bfloat16),
                          (((2,), (1,)), ((0,), (0,))),
                          preferred_element_type=jnp.float32)  # (GH, D, Nq)
    o_t = o_t * pl.reciprocal(denom, approx=True)

    out = o_t.reshape(G, nh, D, N) + lepe + b_ref[...]
    o_ref[...] = out.astype(o_ref.dtype)


def _lepe_tap_weights(conv_w, H_sp, W_sp):
    """conv_w: (3, 3, C) depthwise taps -> (9, C, N) f32 with the window
    boundary masks folded in (tap t = ky*3 + kx)."""
    C = conv_w.shape[-1]
    N = H_sp * W_sp
    n = jnp.arange(N)
    yy, xx = n // W_sp, n % W_sp
    wms = []
    for ky in range(3):
        for kx in range(3):
            dy, dx = ky - 1, kx - 1
            valid = ((yy + dy >= 0) & (yy + dy < H_sp) &
                     (xx + dx >= 0) & (xx + dx < W_sp)).astype(jnp.float32)
            wms.append(conv_w[ky, kx, :].astype(jnp.float32)[:, None] *
                       valid[None, :])
    return jnp.stack(wms, axis=0)                               # (9, C, N)


def _pick_num_windows(Bw, C, N, num_heads, *,
                      vmem_budget_bytes=16 * 1024 * 1024, max_windows=32):
    """Windows per grid step, sized against a conservative VMEM budget so the
    same code works on v7x (64 MiB physical, 32 MiB scoped) and v5e/v6e."""
    per_window = (4 * 2 * C * N * 2             # q/k/v/out blocks, 2x buffered, bf16
                  + 2 * num_heads * N * N * 4   # f32 scores + probabilities
                  + 4 * C * N * 4)              # f32 lepe / output temporaries
    g = max(1, vmem_budget_bytes // per_window)
    g = int(min(g, max_windows, Bw))
    # Keep the 1-D "parallel" grid at >= 2 steps so both v7x TensorCores get
    # work (costs nothing on single-TC v5e/v6e).
    if Bw >= 2:
        g = min(g, max(1, Bw // 2))
    return g


def fused_cswin_attention(qw, kw, vw, conv_w, conv_b, *, H_sp, W_sp, scale,
                          out_dtype=jnp.bfloat16):
    """qw/kw/vw: (Bw, num_heads, D, N) windows. Returns (Bw, num_heads, D, N)."""
    Bw, nh, D, N = qw.shape
    C = nh * D
    G = _pick_num_windows(Bw, C, N, nh)
    Bw_pad = -(-Bw // G) * G
    if Bw_pad != Bw:  # pad with garbage windows (all-zero -> softmax is safe)
        padw = ((0, Bw_pad - Bw), (0, 0), (0, 0), (0, 0))
        qw, kw, vw = (jnp.pad(t, padw) for t in (qw, kw, vw))

    wm = _lepe_tap_weights(conv_w, H_sp, W_sp).reshape(9, nh, D, N)
    bias = conv_b.astype(jnp.float32).reshape(nh, D, 1)

    kern = functools.partial(_fused_lepe_attn_kernel, W_sp=W_sp, scale=scale)
    blk = pl.BlockSpec((G, nh, D, N), lambda i: (i, 0, 0, 0))
    out = pl.pallas_call(
        kern,
        out_shape=jax.ShapeDtypeStruct((Bw_pad, nh, D, N), out_dtype),
        grid_spec=pltpu.PrefetchScalarGridSpec(
            num_scalar_prefetch=0,
            grid=(Bw_pad // G,),
            in_specs=[blk, blk, blk,
                      # constant index maps -> resident, not re-DMA'd per step
                      pl.BlockSpec((9, nh, D, N), lambda i: (0, 0, 0, 0)),
                      pl.BlockSpec((nh, D, 1), lambda i: (0, 0, 0))],
            out_specs=blk),
        compiler_params=pltpu.CompilerParams(
            dimension_semantics=("parallel",),
            vmem_limit_bytes=32 * 1024 * 1024),
    )(qw.astype(jnp.bfloat16), kw.astype(jnp.bfloat16),
      vw.astype(jnp.bfloat16), wm, bias)
    return out[:Bw]


# ----------------------------------------------------------------------------
# Plain-JAX glue (window extraction / reassembly), mirroring the PyTorch code.
# ----------------------------------------------------------------------------
def _im2windows_hdn(x, H_sp, W_sp, num_heads):
    """(B, H, W, C) -> (Bw, nh, D, N): channels on sublanes, positions on lanes."""
    B, H, W, C = x.shape
    D = C // num_heads
    x = x.reshape(B, H // H_sp, H_sp, W // W_sp, W_sp, num_heads, D)
    x = x.transpose(0, 1, 3, 5, 6, 2, 4)       # (B, nH, nW, nh, D, H_sp, W_sp)
    return x.reshape(-1, num_heads, D, H_sp * W_sp)


def _windows2img_hdn(xw, H_sp, W_sp, H, W):
    """(Bw, nh, D, N) -> (B, H, W, C); inverse of _im2windows_hdn."""
    Bw, nh, D, N = xw.shape
    B = Bw // ((H // H_sp) * (W // W_sp))
    x = xw.reshape(B, H // H_sp, W // W_sp, nh, D, H_sp, W_sp)
    x = x.transpose(0, 1, 5, 2, 6, 3, 4)       # (B, nH, H_sp, nW, W_sp, nh, D)
    return x.reshape(B, H, W, nh * D)


def _im2windows_nc(x, H_sp, W_sp):
    """(B, H, W, C) -> (Bw, N, C); used only by the pure-JAX reference."""
    B, H, W, C = x.shape
    x = x.reshape(B, H // H_sp, H_sp, W // W_sp, W_sp, C)
    return x.transpose(0, 1, 3, 2, 4, 5).reshape(-1, H_sp * W_sp, C)


def _windows2img_nc(xw, H_sp, W_sp, H, W):
    B = xw.shape[0] // ((H // H_sp) * (W // W_sp))
    x = xw.reshape(B, H // H_sp, W // W_sp, H_sp, W_sp, -1)
    return x.transpose(0, 1, 3, 2, 4, 5).reshape(B, H, W, -1)


def _reference_windows(qw, kw, vw, conv_w, conv_b, *, H_sp, W_sp, num_heads, scale):
    """Pure-JAX f32 reference for one set of windows (matches the torch math)."""
    Bw, N, C = qw.shape
    D = C // num_heads
    qh = qw.reshape(Bw, N, num_heads, D).transpose(0, 2, 1, 3)
    kh = kw.reshape(Bw, N, num_heads, D).transpose(0, 2, 1, 3)
    vh = vw.reshape(Bw, N, num_heads, D).transpose(0, 2, 1, 3)
    v_sp = vw.reshape(Bw, H_sp, W_sp, C)
    lepe_sp = lax.conv_general_dilated(
        v_sp, conv_w.reshape(3, 3, 1, C), (1, 1), 'SAME',
        dimension_numbers=('NHWC', 'HWIO', 'NHWC'),
        feature_group_count=C) + conv_b.reshape(1, 1, 1, C)
    lepe = lepe_sp.reshape(Bw, N, num_heads, D).transpose(0, 2, 1, 3)
    attn = jax.nn.softmax((qh * scale) @ jnp.swapaxes(kh, -2, -1), axis=-1)
    xh = attn @ vh + lepe
    return xh.transpose(0, 2, 1, 3).reshape(Bw, N, C)


def lepe_attention_forward(qkv, conv_w, conv_b, *, idx, split_size, num_heads,
                           use_pallas=True):
    """qkv: (3, B, H, W, C). Returns (B, Hp, Wp, C), like the torch module
    (bf16 when use_pallas=True; the downstream projection handles the cast)."""
    q, k, v = qkv[0], qkv[1], qkv[2]
    B, H, W, C = q.shape
    if idx == -1:
        H_sp, W_sp = H, W
    elif idx == 0:
        H_sp, W_sp = H, split_size
    elif idx == 1:
        H_sp, W_sp = split_size, W
    else:
        raise ValueError("ERROR MODE")
    head_dim = C // num_heads
    scale = head_dim ** (-0.5)

    pad_r = (W_sp - W % W_sp) % W_sp
    pad_b = (H_sp - H % H_sp) % H_sp
    pad = lambda t: jnp.pad(t, ((0, 0), (0, pad_b), (0, pad_r), (0, 0)))
    q, k, v = pad(q), pad(k), pad(v)
    Hp, Wp = q.shape[1], q.shape[2]

    if use_pallas:
        # Cast to bf16 before the window transpose so the layout copy and the
        # kernel DMA move half the bytes.
        q, k, v = (t.astype(jnp.bfloat16) for t in (q, k, v))
        qw = _im2windows_hdn(q, H_sp, W_sp, num_heads)
        kw = _im2windows_hdn(k, H_sp, W_sp, num_heads)
        vw = _im2windows_hdn(v, H_sp, W_sp, num_heads)
        xw = fused_cswin_attention(qw, kw, vw, conv_w, conv_b,
                                   H_sp=H_sp, W_sp=W_sp, scale=scale)
        return _windows2img_hdn(xw, H_sp, W_sp, Hp, Wp)
    else:
        qw = _im2windows_nc(q, H_sp, W_sp)
        kw = _im2windows_nc(k, H_sp, W_sp)
        vw = _im2windows_nc(v, H_sp, W_sp)
        xw = _reference_windows(qw, kw, vw, conv_w, conv_b,
                                H_sp=H_sp, W_sp=W_sp,
                                num_heads=num_heads, scale=scale)
        return _windows2img_nc(xw, H_sp, W_sp, Hp, Wp)


if __name__ == "__main__":
    # Module-consistent small shapes: dim=64, num_heads=2, 16x16 feature map,
    # split_size=8. idx=0 -> H_sp=16, W_sp=8; idx=1 -> H_sp=8, W_sp=16 (N=128).
    B, H, W, C = 2, 16, 16, 64
    num_heads = 2
    split_size = 8

    key = jax.random.PRNGKey(0)
    k1, k2, k3 = jax.random.split(key, 3)
    qkv = jax.random.normal(k1, (3, B, H, W, C), jnp.float32)
    # Synthetic params for get_v = Conv2d(dim, dim, 3, padding=1, groups=dim):
    # conv_w[ky, kx, c] is the depthwise tap, conv_b[c] the bias.
    conv_w = 0.1 * jax.random.normal(k2, (3, 3, C), jnp.float32)
    conv_b = 0.1 * jax.random.normal(k3, (C,), jnp.float32)

    for idx in (0, 1):
        out = lepe_attention_forward(qkv, conv_w, conv_b, idx=idx,
                                     split_size=split_size,
                                     num_heads=num_heads, use_pallas=True)
        out = jax.block_until_ready(out)
        ref = lepe_attention_forward(qkv, conv_w, conv_b, idx=idx,
                                     split_size=split_size,
                                     num_heads=num_heads, use_pallas=False)
        ref = jax.block_until_ready(ref)
        # bf16 I/O + bf16 MXU operands + approx reciprocal vs pure-f32 reference.
        np.testing.assert_allclose(np.asarray(out.astype(jnp.float32)),
                                   np.asarray(ref), rtol=5e-2, atol=5e-2)
    print("KERNEL_OK")
</pallas_src>

<mosaic_0001>
module attributes {stable_mosaic.version = 11 : i64} {
  func.func @_fused_lepe_attn_kernel(%arg0: i32, %arg1: memref<2x2x32x128xbf16, #tpu.memory_space<vmem>>, %arg2: memref<2x2x32x128xbf16, #tpu.memory_space<vmem>>, %arg3: memref<2x2x32x128xbf16, #tpu.memory_space<vmem>>, %arg4: memref<9x2x32x128xf32, #tpu.memory_space<vmem>>, %arg5: memref<2x32x1xf32, #tpu.memory_space<vmem>>, %arg6: memref<2x2x32x128xbf16, #tpu.memory_space<vmem>>) attributes {dimension_semantics = [#tpu.dimension_semantics<parallel>], iteration_bounds = array<i64: 2>, scalar_prefetch = 0 : i64, scratch_operands = 0 : i64, tpu.core_type = #tpu.core_type<tc>, window_params = [{transform_indices = @transform_0, window_bounds = array<i64: 2, 2, 32, 128>}, {transform_indices = @transform_1, window_bounds = array<i64: 2, 2, 32, 128>}, {transform_indices = @transform_2, window_bounds = array<i64: 2, 2, 32, 128>}, {pipeline_mode = #tpu.pipeline_mode<synchronous>, transform_indices = @transform_3, window_bounds = array<i64: 9, 2, 32, 128>}, {pipeline_mode = #tpu.pipeline_mode<synchronous>, transform_indices = @transform_4, window_bounds = array<i64: 2, 32, 1>}, {transform_indices = @transform_5, window_bounds = array<i64: 2, 2, 32, 128>}]} {
    %c0 = arith.constant 0 : index
    %c0_0 = arith.constant 0 : index
    %c0_1 = arith.constant 0 : index
    %c0_2 = arith.constant 0 : index
    %0 = vector.load %arg3[%c0, %c0_0, %c0_1, %c0_2] : memref<2x2x32x128xbf16, #tpu.memory_space<vmem>>, vector<2x2x32x128xbf16>
    %1 = arith.extf %0 : vector<2x2x32x128xbf16> to vector<2x2x32x128xf32>
    %c4 = arith.constant 4 : index
    %c0_3 = arith.constant 0 : index
    %c0_4 = arith.constant 0 : index
    %c0_5 = arith.constant 0 : index
    %2 = vector.load %arg4[%c4, %c0_3, %c0_4, %c0_5] : memref<9x2x32x128xf32, #tpu.memory_space<vmem>>, vector<1x2x32x128xf32>
    %3 = vector.shape_cast %2 : vector<1x2x32x128xf32> to vector<2x32x128xf32>
    %4 = vector.shape_cast %3 : vector<2x32x128xf32> to vector<1x2x32x128xf32>
    %5 = vector.broadcast %4 : vector<1x2x32x128xf32> to vector<2x2x32x128xf32>
    %6 = arith.mulf %1, %5 : vector<2x2x32x128xf32>
    %c9_i32 = arith.constant 9 : i32
    %7 = tpu.dynamic_rotate %1 by %c9_i32 dim 3 : vector<2x2x32x128xf32>, i32 -> vector<2x2x32x128xf32>
    %c0_6 = arith.constant 0 : index
    %c0_7 = arith.constant 0 : index
    %c0_8 = arith.constant 0 : index
    %c0_9 = arith.constant 0 : index
    %8 = vector.load %arg4[%c0_6, %c0_7, %c0_8, %c0_9] : memref<9x2x32x128xf32, #tpu.memory_space<vmem>>, vector<1x2x32x128xf32>
    %9 = vector.shape_cast %8 : vector<1x2x32x128xf32> to vector<2x32x128xf32>
    %10 = vector.shape_cast %9 : vector<2x32x128xf32> to vector<1x2x32x128xf32>
    %11 = vector.broadcast %10 : vector<1x2x32x128xf32> to vector<2x2x32x128xf32>
    %12 = arith.mulf %7, %11 : vector<2x2x32x128xf32>
    %13 = arith.addf %6, %12 : vector<2x2x32x128xf32>
    %c8_i32 = arith.constant 8 : i32
    %14 = tpu.dynamic_rotate %1 by %c8_i32 dim 3 : vector<2x2x32x128xf32>, i32 -> vector<2x2x32x128xf32>
    %c1 = arith.constant 1 : index
    %c0_10 = arith.constant 0 : index
    %c0_11 = arith.constant 0 : index
    %c0_12 = arith.constant 0 : index
    %15 = vector.load %arg4[%c1, %c0_10, %c0_11, %c0_12] : memref<9x2x32x128xf32, #tpu.memory_space<vmem>>, vector<1x2x32x128xf32>
    %16 = vector.shape_cast %15 : vector<1x2x32x128xf32> to vector<2x32x128xf32>
    %17 = vector.shape_cast %16 : vector<2x32x128xf32> to vector<1x2x32x128xf32>
    %18 = vector.broadcast %17 : vector<1x2x32x128xf32> to vector<2x2x32x128xf32>
    %19 = arith.mulf %14, %18 : vector<2x2x32x128xf32>
    %20 = arith.addf %13, %19 : vector<2x2x32x128xf32>
    %c7_i32 = arith.constant 7 : i32
    %21 = tpu.dynamic_rotate %1 by %c7_i32 dim 3 : vector<2x2x32x128xf32>, i32 -> vector<2x2x32x128xf32>
    %c2 = arith.constant 2 : index
    %c0_13 = arith.constant 0 : index
    %c0_14 = arith.constant 0 : index
    %c0_15 = arith.constant 0 : index
    %22 = vector.load %arg4[%c2, %c0_13, %c0_14, %c0_15] : memref<9x2x32x128xf32, #tpu.memory_space<vmem>>, vector<1x2x32x128xf32>
    %23 = vector.shape_cast %22 : vector<1x2x32x128xf32> to vector<2x32x128xf32>
    %24 = vector.shape_cast %23 : vector<2x32x128xf32> to vector<1x2x32x128xf32>
    %25 = vector.broadcast %24 : vector<1x2x32x128xf32> to vector<2x2x32x128xf32>
    %26 = arith.mulf %21, %25 : vector<2x2x32x128xf32>
    %27 = arith.addf %20, %26 : vector<2x2x32x128xf32>
    %c1_i32 = arith.constant 1 : i32
    %28 = tpu.dynamic_rotate %1 by %c1_i32 dim 3 : vector<2x2x32x128xf32>, i32 -> vector<2x2x32x128xf32>
    %c3 = arith.constant 3 : index
    %c0_16 = arith.constant 0 : index
    %c0_17 = arith.constant 0 : index
    %c0_18 = arith.constant 0 : index
    %29 = vector.load %arg4[%c3, %c0_16, %c0_17, %c0_18] : memref<9x2x32x128xf32, #tpu.memory_space<vmem>>, vector<1x2x32x128xf32>
    %30 = vector.shape_cast %29 : vector<1x2x32x128xf32> to vector<2x32x128xf32>
    %31 = vector.shape_cast %30 : vector<2x32x128xf32> to vector<1x2x32x128xf32>
    %32 = vector.broadcast %31 : vector<1x2x32x128xf32> to vector<2x2x32x128xf32>
    %33 = arith.mulf %28, %32 : vector<2x2x32x128xf32>
    %34 = arith.addf %27, %33 : vector<2x2x32x128xf32>
    %c127_i32 = arith.constant 127 : i32
    %35 = tpu.dynamic_rotate %1 by %c127_i32 dim 3 : vector<2x2x32x128xf32>, i32 -> vector<2x2x32x128xf32>
    %c5 = arith.constant 5 : index
    %c0_19 = arith.constant 0 : index
    %c0_20 = arith.constant 0 : index
    %c0_21 = arith.constant 0 : index
    %36 = vector.load %arg4[%c5, %c0_19, %c0_20, %c0_21] : memref<9x2x32x128xf32, #tpu.memory_space<vmem>>, vector<1x2x32x128xf32>
    %37 = vector.shape_cast %36 : vector<1x2x32x128xf32> to vector<2x32x128xf32>
    %38 = vector.shape_cast %37 : vector<2x32x128xf32> to vector<1x2x32x128xf32>
    %39 = vector.broadcast %38 : vector<1x2x32x128xf32> to vector<2x2x32x128xf32>
    %40 = arith.mulf %35, %39 : vector<2x2x32x128xf32>
    %41 = arith.addf %34, %40 : vector<2x2x32x128xf32>
    %c121_i32 = arith.constant 121 : i32
    %42 = tpu.dynamic_rotate %1 by %c121_i32 dim 3 : vector<2x2x32x128xf32>, i32 -> vector<2x2x32x128xf32>
    %c6 = arith.constant 6 : index
    %c0_22 = arith.constant 0 : index
    %c0_23 = arith.constant 0 : index
    %c0_24 = arith.constant 0 : index
    %43 = vector.load %arg4[%c6, %c0_22, %c0_23, %c0_24] : memref<9x2x32x128xf32, #tpu.memory_space<vmem>>, vector<1x2x32x128xf32>
    %44 = vector.shape_cast %43 : vector<1x2x32x128xf32> to vector<2x32x128xf32>
    %45 = vector.shape_cast %44 : vector<2x32x128xf32> to vector<1x2x32x128xf32>
    %46 = vector.broadcast %45 : vector<1x2x32x128xf32> to vector<2x2x32x128xf32>
    %47 = arith.mulf %42, %46 : vector<2x2x32x128xf32>
    %48 = arith.addf %41, %47 : vector<2x2x32x128xf32>
    %c120_i32 = arith.constant 120 : i32
    %49 = tpu.dynamic_rotate %1 by %c120_i32 dim 3 : vector<2x2x32x128xf32>, i32 -> vector<2x2x32x128xf32>
    %c7 = arith.constant 7 : index
    %c0_25 = arith.constant 0 : index
    %c0_26 = arith.constant 0 : index
    %c0_27 = arith.constant 0 : index
    %50 = vector.load %arg4[%c7, %c0_25, %c0_26, %c0_27] : memref<9x2x32x128xf32, #tpu.memory_space<vmem>>, vector<1x2x32x128xf32>
    %51 = vector.shape_cast %50 : vector<1x2x32x128xf32> to vector<2x32x128xf32>
    %52 = vector.shape_cast %51 : vector<2x32x128xf32> to vector<1x2x32x128xf32>
    %53 = vector.broadcast %52 : vector<1x2x32x128xf32> to vector<2x2x32x128xf32>
    %54 = arith.mulf %49, %53 : vector<2x2x32x128xf32>
    %55 = arith.addf %48, %54 : vector<2x2x32x128xf32>
    %c119_i32 = arith.constant 119 : i32
    %56 = tpu.dynamic_rotate %1 by %c119_i32 dim 3 : vector<2x2x32x128xf32>, i32 -> vector<2x2x32x128xf32>
    %c8 = arith.constant 8 : index
    %c0_28 = arith.constant 0 : index
    %c0_29 = arith.constant 0 : index
    %c0_30 = arith.constant 0 : index
    %57 = vector.load %arg4[%c8, %c0_28, %c0_29, %c0_30] : memref<9x2x32x128xf32, #tpu.memory_space<vmem>>, vector<1x2x32x128xf32>
    %58 = vector.shape_cast %57 : vector<1x2x32x128xf32> to vector<2x32x128xf32>
    %59 = vector.shape_cast %58 : vector<2x32x128xf32> to vector<1x2x32x128xf32>
    %60 = vector.broadcast %59 : vector<1x2x32x128xf32> to vector<2x2x32x128xf32>
    %61 = arith.mulf %56, %60 : vector<2x2x32x128xf32>
    %62 = arith.addf %55, %61 : vector<2x2x32x128xf32>
    %c0_31 = arith.constant 0 : index
    %c0_32 = arith.constant 0 : index
    %c0_33 = arith.constant 0 : index
    %c0_34 = arith.constant 0 : index
    %63 = vector.load %arg1[%c0_31, %c0_32, %c0_33, %c0_34] : memref<2x2x32x128xbf16, #tpu.memory_space<vmem>>, vector<2x2x32x128xbf16>
    %cst = arith.constant 1.767580e-01 : bf16
    %64 = vector.broadcast %cst : bf16 to vector<2x2x32x128xbf16>
    %65 = arith.mulf %63, %64 : vector<2x2x32x128xbf16>
    %66 = vector.shape_cast %65 : vector<2x2x32x128xbf16> to vector<4x32x128xbf16>
    %c0_35 = arith.constant 0 : index
    %c0_36 = arith.constant 0 : index
    %c0_37 = arith.constant 0 : index
    %c0_38 = arith.constant 0 : index
    %67 = vector.load %arg2[%c0_35, %c0_36, %c0_37, %c0_38] : memref<2x2x32x128xbf16, #tpu.memory_space<vmem>>, vector<2x2x32x128xbf16>
    %68 = vector.shape_cast %67 : vector<2x2x32x128xbf16> to vector<4x32x128xbf16>
    %c0_39 = arith.constant 0 : index
    %c0_40 = arith.constant 0 : index
    %c0_41 = arith.constant 0 : index
    %c0_42 = arith.constant 0 : index
    %69 = vector.load %arg3[%c0_39, %c0_40, %c0_41, %c0_42] : memref<2x2x32x128xbf16, #tpu.memory_space<vmem>>, vector<2x2x32x128xbf16>
    %70 = vector.shape_cast %69 : vector<2x2x32x128xbf16> to vector<4x32x128xbf16>
    %cst_43 = arith.constant dense<0.000000e+00> : vector<4x128x128xf32>
    %71 = tpu.matmul %68, %66, %cst_43 {dimension_numbers = #tpu.dot_dimension_numbers<[1], [1], [2], [2], [0, 0, 0, 2, 1, 2], [0], [0]>} : vector<4x32x128xbf16>, vector<4x32x128xbf16>, vector<4x128x128xf32> -> vector<4x128x128xf32>
    %cst_44 = arith.constant dense<0xFF800000> : vector<4x128xf32>
    %72 = vector.multi_reduction <maximumf>, %71, %cst_44 [1] : vector<4x128x128xf32> to vector<4x128xf32>
    %73 = vector.shape_cast %72 : vector<4x128xf32> to vector<4x1x128xf32>
    %74 = vector.broadcast %73 : vector<4x1x128xf32> to vector<4x128x128xf32>
    %75 = arith.subf %71, %74 : vector<4x128x128xf32>
    %76 = math.exp %75 : vector<4x128x128xf32>
    %cst_45 = arith.constant dense<0.000000e+00> : vector<4x128xf32>
    %77 = vector.multi_reduction <add>, %76, %cst_45 [1] : vector<4x128x128xf32> to vector<4x128xf32>
    %78 = vector.shape_cast %77 : vector<4x128xf32> to vector<4x1x128xf32>
    %79 = arith.truncf %76 : vector<4x128x128xf32> to vector<4x128x128xbf16>
    %cst_46 = arith.constant dense<0.000000e+00> : vector<4x32x128xf32>
    %80 = tpu.matmul %70, %79, %cst_46 {dimension_numbers = #tpu.dot_dimension_numbers<[2], [1], [1], [2], [0, 0, 0, 1, 1, 2], [0], [0]>} : vector<4x32x128xbf16>, vector<4x128x128xbf16>, vector<4x32x128xf32> -> vector<4x32x128xf32>
    %81 = tpu.reciprocal %78 {approx = true} : vector<4x1x128xf32> -> vector<4x1x128xf32>
    %82 = vector.broadcast %81 : vector<4x1x128xf32> to vector<4x32x128xf32>
    %83 = arith.mulf %80, %82 : vector<4x32x128xf32>
    %84 = vector.shape_cast %83 : vector<4x32x128xf32> to vector<2x2x32x128xf32>
    %85 = arith.addf %84, %62 : vector<2x2x32x128xf32>
    %c0_47 = arith.constant 0 : index
    %c0_48 = arith.constant 0 : index
    %c0_49 = arith.constant 0 : index
    %86 = vector.load %arg5[%c0_47, %c0_48, %c0_49] : memref<2x32x1xf32, #tpu.memory_space<vmem>>, vector<2x32x1xf32>
    %87 = vector.shape_cast %86 : vector<2x32x1xf32> to vector<1x2x32x1xf32>
    %88 = vector.broadcast %87 : vector<1x2x32x1xf32> to vector<2x2x32x128xf32>
    %89 = arith.addf %85, %88 : vector<2x2x32x128xf32>
    %90 = arith.truncf %89 : vector<2x2x32x128xf32> to vector<2x2x32x128xbf16>
    %c0_50 = arith.constant 0 : index
    %c0_51 = arith.constant 0 : index
    %c0_52 = arith.constant 0 : index
    %c0_53 = arith.constant 0 : index
    %91 = vector.load %arg6[%c0_50, %c0_51, %c0_52, %c0_53] : memref<2x2x32x128xbf16, #tpu.memory_space<vmem>>, vector<2x2x32x128xbf16>
    tpu.vector_store %arg6[%c0_50, %c0_51, %c0_52, %c0_53], %90 {strides = array<i32>} : memref<2x2x32x128xbf16, #tpu.memory_space<vmem>>, vector<2x2x32x128xbf16>,
    return
  }
  func.func @transform_0(%arg0: i32) -> (i32, i32, i32, i32) {
    %c0_i32 = arith.constant 0 : i32
    %c0_i32_0 = arith.constant 0 : i32
    %c0_i32_1 = arith.constant 0 : i32
    %c0_i32_2 = arith.constant 0 : i32
    return %arg0, %c0_i32, %c0_i32_0, %c0_i32_1 : i32, i32, i32, i32
  }
  func.func @transform_1(%arg0: i32) -> (i32, i32, i32, i32) {
    %c0_i32 = arith.constant 0 : i32
    %c0_i32_0 = arith.constant 0 : i32
    %c0_i32_1 = arith.constant 0 : i32
    %c0_i32_2 = arith.constant 0 : i32
    return %arg0, %c0_i32, %c0_i32_0, %c0_i32_1 : i32, i32, i32, i32
  }
  func.func @transform_2(%arg0: i32) -> (i32, i32, i32, i32) {
    %c0_i32 = arith.constant 0 : i32
    %c0_i32_0 = arith.constant 0 : i32
    %c0_i32_1 = arith.constant 0 : i32
    %c0_i32_2 = arith.constant 0 : i32
    return %arg0, %c0_i32, %c0_i32_0, %c0_i32_1 : i32, i32, i32, i32
  }
  func.func @transform_3(%arg0: i32) -> (i32, i32, i32, i32) {
    %c0_i32 = arith.constant 0 : i32
    %c0_i32_0 = arith.constant 0 : i32
    %c0_i32_1 = arith.constant 0 : i32
    %c0_i32_2 = arith.constant 0 : i32
    %c0_i32_3 = arith.constant 0 : i32
    return %c0_i32, %c0_i32_0, %c0_i32_1, %c0_i32_2 : i32, i32, i32, i32
  }
  func.func @transform_4(%arg0: i32) -> (i32, i32, i32) {
    %c0_i32 = arith.constant 0 : i32
    %c0_i32_0 = arith.constant 0 : i32
    %c0_i32_1 = arith.constant 0 : i32
    %c0_i32_2 = arith.constant 0 : i32
    return %c0_i32, %c0_i32_0, %c0_i32_1 : i32, i32, i32
  }
  func.func @transform_5(%arg0: i32) -> (i32, i32, i32, i32) {
    %c0_i32 = arith.constant 0 : i32
    %c0_i32_0 = arith.constant 0 : i32
    %c0_i32_1 = arith.constant 0 : i32
    %c0_i32_2 = arith.constant 0 : i32
    return %arg0, %c0_i32, %c0_i32_0, %c0_i32_1 : i32, i32, i32, i32
  }
}

</mosaic_0001>

<llo_original>
// kernel: tpu_custom_call.1
$region0: #{tpu_custom_call.1}
  #allocation0 [shape = 'u32[]', space=smem, size = 0x4, offset = 0x4, fixed_abs, tag = 'smem constant byte address 0x4 - core index']
  #allocation1 [shape = 'u32[72,128]{1,0:T(1,128)}', space=vmem, size = 0x9000, scoped, tag = 'internal scratch']
  %s0 = inlined_call_operand.hbm [shape: bf16[4,2,32,128], index: 0, kind: input, shape index: {}]
  %s1 = inlined_call_operand.hbm [shape: bf16[4,2,32,128], index: 1, kind: input, shape index: {}]
  %s2 = inlined_call_operand.hbm [shape: bf16[4,2,32,128], index: 2, kind: input, shape index: {}]
  %s3 = inlined_call_operand.hbm [shape: f32[9,2,32,128], index: 3, kind: input, shape index: {}]
  %s4 = inlined_call_operand.vmem [shape: f32[2,32,1], index: 4, kind: input, shape index: {}]
  %s5 = inlined_call_operand.hbm [shape: bf16[4,2,32,128], index: 5, kind: output, shape index: {}]
  %s6 = sld [smem:[#allocation0]]
  $region69: #{tpu_custom_call.1} parent=0
    _
  %s8 = ssub.s32 1, %s6
  %s9 = scalar_select 0, %s8, %s6
  $region1: #{tpu_custom_call.1} parent=0
    #allocation2 [shape = 'u8[65536]{0}', space=vmem, size = 0x10000, scoped, tag = 'input window, operand 0']
    #allocation3 [shape = 's32[2]{0}', space=sflag, size = 0x8, scoped, tag = 'scoped memory for tpu_custom_call.1']
    #allocation4 [shape = 's32[2]{0}', space=sflag, size = 0x8, scoped, tag = 'scoped memory for tpu_custom_call.1']
    #allocation5 [shape = 'u8[65536]{0}', space=vmem, size = 0x10000, scoped, tag = 'input window, operand 1']
    #allocation6 [shape = 's32[2]{0}', space=sflag, size = 0x8, scoped, tag = 'scoped memory for tpu_custom_call.1']
    #allocation7 [shape = 'u8[65536]{0}', space=vmem, size = 0x10000, scoped, tag = 'input window, operand 2']
    #allocation8 [shape = 'u8[294912]{0}', space=vmem, size = 0x48000, scoped, tag = 'input window, operand 3, single buffered']
    #allocation9 [shape = 's32[1]{0}', space=sflag, size = 0x4, scoped, tag = 'scoped memory for tpu_custom_call.1']
    #allocation10 [shape = 'u8[65536]{0}', space=vmem, size = 0x10000, scoped, tag = 'output window, operand 0']
    %10 = vsyncpa [#allocation3], 0
    %s11 = scalar_lea.sflag [#allocation3], 1
    %12 = vsyncpa %s11, 0
    %13 = vsyncpa [#allocation6], 0
    %s14 = scalar_lea.sflag [#allocation6], 1
    %15 = vsyncpa %s14, 0
    %16 = vsyncpa [#allocation9], 0
    %17 = vsyncpa [#allocation4], 0
    %s18 = scalar_lea.sflag [#allocation4], 1
    %19 = vsyncpa %s18, 0
    loop: start=0, step=1, limit=4
    $region2: #{tpu_custom_call.1} parent=1 // loop_pre_header
      _
    $region3: #{tpu_custom_call.1} parent=1 // loop_header
      %s21 = sphi 0, %s25
      %p22 = scmp.ge.s32.totalorder %s21, 4
      %s31 = sphi 0, %s33
      %s34 = sphi 0, %s31
      %s35 = sphi 0, %s34
      %s51 = sphi 0, %s35
      %s57 = sphi 0, %s59
      %s60 = sphi 0, %s57
      %s61 = sphi 0, %s60
      %s77 = sphi 0, %s61
      %s83 = sphi 0, %s85
      %s86 = sphi 0, %s83
      %s87 = sphi 0, %s86
      %s103 = sphi 0, %s87
      %s107 = sphi 0, %s107
      %s109 = sphi 0, %s107
      %s110 = sphi 0, %s109
      %s124 = sphi 0, %s110
      %s128 = sphi 0, %s128
      %s130 = sphi 0, %s128
      %s131 = sphi 0, %s130
      %s145 = sphi 0, %s131
      %s151 = sphi 0, %s153
      %s154 = sphi 0, %s151
      %s155 = sphi 0, %s154
      %s171 = sphi 0, %s155
    $region4: #{tpu_custom_call.1} parent=1 // loop_header_branch
      %24 = sbr.rel (%p22) target = $region8
    $region5: #{tpu_custom_call.1} parent=1 // loop_body
      %s26 = ssub.s32 %s21, 1
      %s27 = ssub.s32 %s21, 2
      %s28 = sadd.s32 %s21, 1
      %s29 = ssub.s32 %s21, %s28
      %p30 = scmp.eq.s32.totalorder %s29, 0
      %s32 = sadd.s32 %s31, 1
      %s33 = scalar_select %p30, %s31, %s32
      %p36 = pneg %p30
      %p37 = scmp.eq.s32.totalorder %s21, 1
      %p38 = por %p36, %p37
      %p39 = scmp.ne.s32.totalorder %s31, %s34
      %p40 = scmp.eq.s32.totalorder %s21, 0
      %p41 = por %p39, %p40
      %p42 = scmp.ne.s32.totalorder %s31, %s34
      %p43 = scmp.eq.s32.totalorder %s26, 1
      %p44 = por %p42, %p43
      %p45 = scmp.ne.s32.totalorder %s34, %s35
      %p46 = scmp.eq.s32.totalorder %s26, 0
      %p47 = por %p45, %p46
      %p48 = scmp.ne.s32.totalorder %s34, %s35
      %p49 = scmp.eq.s32.totalorder %s27, 1
      %p50 = por %p48, %p49
      %p52 = scmp.ne.s32.totalorder %s35, %s51
      %p53 = scmp.eq.s32.totalorder %s27, 0
      %p54 = por %p52, %p53
      %s55 = ssub.s32 %s21, %s28
      %p56 = scmp.eq.s32.totalorder %s55, 0
      %s58 = sadd.s32 %s57, 1
      %s59 = scalar_select %p56, %s57, %s58
      %p62 = pneg %p56
      %p63 = scmp.eq.s32.totalorder %s21, 1
      %p64 = por %p62, %p63
      %p65 = scmp.ne.s32.totalorder %s57, %s60
      %p66 = scmp.eq.s32.totalorder %s21, 0
      %p67 = por %p65, %p66
      %p68 = scmp.ne.s32.totalorder %s57, %s60
      %p69 = scmp.eq.s32.totalorder %s26, 1
      %p70 = por %p68, %p69
      %p71 = scmp.ne.s32.totalorder %s60, %s61
      %p72 = scmp.eq.s32.totalorder %s26, 0
      %p73 = por %p71, %p72
      %p74 = scmp.ne.s32.totalorder %s60, %s61
      %p75 = scmp.eq.s32.totalorder %s27, 1
      %p76 = por %p74, %p75
      %p78 = scmp.ne.s32.totalorder %s61, %s77
      %p79 = scmp.eq.s32.totalorder %s27, 0
      %p80 = por %p78, %p79
      %s81 = ssub.s32 %s21, %s28
      %p82 = scmp.eq.s32.totalorder %s81, 0
      %s84 = sadd.s32 %s83, 1
      %s85 = scalar_select %p82, %s83, %s84
      %p88 = pneg %p82
      %p89 = scmp.eq.s32.totalorder %s21, 1
      %p90 = por %p88, %p89
      %p91 = scmp.ne.s32.totalorder %s83, %s86
      %p92 = scmp.eq.s32.totalorder %s21, 0
      %p93 = por %p91, %p92
      %p94 = scmp.ne.s32.totalorder %s83, %s86
      %p95 = scmp.eq.s32.totalorder %s26, 1
      %p96 = por %p94, %p95
      %p97 = scmp.ne.s32.totalorder %s86, %s87
      %p98 = scmp.eq.s32.totalorder %s26, 0
      %p99 = por %p97, %p98
      %p100 = scmp.ne.s32.totalorder %s86, %s87
      %p101 = scmp.eq.s32.totalorder %s27, 1
      %p102 = por %p100, %p101
      %p104 = scmp.ne.s32.totalorder %s87, %s103
      %p105 = scmp.eq.s32.totalorder %s27, 0
      %p106 = por %p104, %p105
      %s108 = sadd.s32 %s107, 1
      %p111 = scmp.eq.s32.totalorder %s21, 1
      %p112 = scmp.ne.s32.totalorder %s107, %s109
      %p113 = scmp.eq.s32.totalorder %s21, 0
      %p114 = por %p112, %p113
      %p115 = scmp.ne.s32.totalorder %s107, %s109
      %p116 = scmp.eq.s32.totalorder %s26, 1
      %p117 = por %p115, %p116
      %p118 = scmp.ne.s32.totalorder %s109, %s110
      %p119 = scmp.eq.s32.totalorder %s26, 0
      %p120 = por %p118, %p119
      %p121 = scmp.ne.s32.totalorder %s109, %s110
      %p122 = scmp.eq.s32.totalorder %s27, 1
      %p123 = por %p121, %p122
      %p125 = scmp.ne.s32.totalorder %s110, %s124
      %p126 = scmp.eq.s32.totalorder %s27, 0
      %p127 = por %p125, %p126
      %s129 = sadd.s32 %s128, 1
      %p132 = scmp.eq.s32.totalorder %s21, 1
      %p133 = scmp.ne.s32.totalorder %s128, %s130
      %p134 = scmp.eq.s32.totalorder %s21, 0
      %p135 = por %p133, %p134
      %p136 = scmp.ne.s32.totalorder %s128, %s130
      %p137 = scmp.eq.s32.totalorder %s26, 1
      %p138 = por %p136, %p137
      %p139 = scmp.ne.s32.totalorder %s130, %s131
      %p140 = scmp.eq.s32.totalorder %s26, 0
      %p141 = por %p139, %p140
      %p142 = scmp.ne.s32.totalorder %s130, %s131
      %p143 = scmp.eq.s32.totalorder %s27, 1
      %p144 = por %p142, %p143
      %p146 = scmp.ne.s32.totalorder %s131, %s145
      %p147 = scmp.eq.s32.totalorder %s27, 0
      %p148 = por %p146, %p147
      %s149 = ssub.s32 %s21, %s28
      %p150 = scmp.eq.s32.totalorder %s149, 0
      %s152 = sadd.s32 %s151, 1
      %s153 = scalar_select %p150, %s151, %s152
      %p156 = pneg %p150
      %p157 = scmp.eq.s32.totalorder %s21, 1
      %p158 = por %p156, %p157
      %p159 = scmp.ne.s32.totalorder %s151, %s154
      %p160 = scmp.eq.s32.totalorder %s21, 0
      %p161 = por %p159, %p160
      %p162 = scmp.ne.s32.totalorder %s151, %s154
      %p163 = scmp.eq.s32.totalorder %s26, 1
      %p164 = por %p162, %p163
      %p165 = scmp.ne.s32.totalorder %s154, %s155
      %p166 = scmp.eq.s32.totalorder %s26, 0
      %p167 = por %p165, %p166
      %p168 = scmp.ne.s32.totalorder %s154, %s155
      %p169 = scmp.eq.s32.totalorder %s27, 1
      %p170 = por %p168, %p169
      %p172 = scmp.ne.s32.totalorder %s155, %s171
      %p173 = scmp.eq.s32.totalorder %s27, 0
      %p174 = por %p172, %p173
      %p175 = scmp.le.s32.totalorder 1, %s21
      %p176 = scmp.lt.s32.totalorder %s21, 3
      %p177 = pnand %p175, %p176
      %p178 = pneg %p177
      // Predicated region
      $region9: #{tpu_custom_call.1} parent=5 // pred_check
        _
      $region10: #{tpu_custom_call.1} parent=5 // pred_check_branch
        %180 = sbr.rel (%p177) target = $region12
      $region11: #{tpu_custom_call.1} parent=5 // pred_region
        %s181 = ssub.s32 %s21, 1
        // Predicated region
        $region13: #{tpu_custom_call.1} parent=11 // pred_check
          %p182 = pneg %p120
        $region14: #{tpu_custom_call.1} parent=11 // pred_check_branch
          %184 = sbr.rel (%p182) target = $region16
        $region15: #{tpu_custom_call.1} parent=11 // pred_region
          %186 = vsyncadd [#allocation9], 0
          %s187 = sshll.u32 %s3, 4
          %s188 = int_to_ptr.hbm [resolvable:$true] %s187
          %s189 = sshll.u32 [#allocation8], 4
          %s190 = int_to_ptr.vmem [resolvable:$true] %s189
          %195 = dma.hbm_to_vmem [thread:$0]  %s188, 9216, %s190, [#allocation9], 128, 128, 8
        $region16: #{tpu_custom_call.1} parent=11 // pred_fallthru
          _
        // Predicated region
        $region17: #{tpu_custom_call.1} parent=11 // pred_check
          %p196 = pneg %p141
        $region18: #{tpu_custom_call.1} parent=11 // pred_check_branch
          %198 = sbr.rel (%p196) target = $region20
        $region19: #{tpu_custom_call.1} parent=11 // pred_region
          _
        $region20: #{tpu_custom_call.1} parent=11 // pred_fallthru
          _
      $region12: #{tpu_custom_call.1} parent=5 // pred_fallthru
        _
      %p199 = scmp.lt.s32.totalorder %s21, 2
      // Predicated region
      $region21: #{tpu_custom_call.1} parent=5 // pred_check
        %p200 = pneg %p199
      $region22: #{tpu_custom_call.1} parent=5 // pred_check_branch
        %202 = sbr.rel (%p200) target = $region24
      $region23: #{tpu_custom_call.1} parent=5 // pred_region
        // Predicated region
        $region25: #{tpu_custom_call.1} parent=23 // pred_check
          %p203 = pneg %p41
        $region26: #{tpu_custom_call.1} parent=23 // pred_check_branch
          %205 = sbr.rel (%p203) target = $region28
        $region27: #{tpu_custom_call.1} parent=23 // pred_region
          %s206 = sand.u32 %s31, 1
          %s207 = scalar_lea.sflag [#allocation3], %s206
          %s208 = sand.u32 %s31, 1
          %s209 = smul.addr %s208, 64
          %s210 = scalar_lea.vmem [#allocation2], %s209
          %s211 = smul.u32 2, %s21
          %213 = vsyncadd %s207, 0
          %s214 = smul.addr %s211, 8
          %s215 = smul.addr %s214, 4
          %s216 = scalar_lea.hbm %s0, %s215
          %s217 = sshll.u32 %s216, 4
          %s218 = int_to_ptr.hbm [resolvable:$true] %s217
          %s219 = sshll.u32 %s210, 4
          %s220 = int_to_ptr.vmem [resolvable:$true] %s219
          %225 = dma.hbm_to_vmem [thread:$0]  %s218, 1024, %s220, %s207, 64, 64, 4
        $region28: #{tpu_custom_call.1} parent=23 // pred_fallthru
          _
        // Predicated region
        $region29: #{tpu_custom_call.1} parent=23 // pred_check
          %p226 = pneg %p67
        $region30: #{tpu_custom_call.1} parent=23 // pred_check_branch
          %228 = sbr.rel (%p226) target = $region32
        $region31: #{tpu_custom_call.1} parent=23 // pred_region
          %s229 = sand.u32 %s21, 1
          %s230 = scalar_lea.sflag [#allocation6], %s229
          %s231 = sand.u32 %s57, 1
          %s232 = smul.addr %s231, 64
          %s233 = scalar_lea.vmem [#allocation5], %s232
          %s234 = smul.u32 2, %s21
          %236 = vsyncadd %s230, 0
          %s237 = smul.addr %s234, 8
          %s238 = smul.addr %s237, 4
          %s239 = scalar_lea.hbm %s1, %s238
          %s240 = sshll.u32 %s239, 4
          %s241 = int_to_ptr.hbm [resolvable:$true] %s240
          %s242 = sshll.u32 %s233, 4
          %s243 = int_to_ptr.vmem [resolvable:$true] %s242
          %248 = dma.hbm_to_vmem [thread:$0]  %s241, 1024, %s243, %s230, 64, 64, 4
        $region32: #{tpu_custom_call.1} parent=23 // pred_fallthru
          _
        // Predicated region
        $region33: #{tpu_custom_call.1} parent=23 // pred_check
          %p249 = pneg %p93
        $region34: #{tpu_custom_call.1} parent=23 // pred_check_branch
          %251 = sbr.rel (%p249) target = $region36
        $region35: #{tpu_custom_call.1} parent=23 // pred_region
          %s252 = sand.u32 %s21, 1
          %s253 = scalar_lea.sflag [#allocation6], %s252
          %s254 = sand.u32 %s83, 1
          %s255 = smul.addr %s254, 64
          %s256 = scalar_lea.vmem [#allocation7], %s255
          %s257 = smul.u32 2, %s21
          %259 = vsyncadd %s253, 0
          %s260 = smul.addr %s257, 8
          %s261 = smul.addr %s260, 4
          %s262 = scalar_lea.hbm %s2, %s261
          %s263 = sshll.u32 %s262, 4
          %s264 = int_to_ptr.hbm [resolvable:$true] %s263
          %s265 = sshll.u32 %s256, 4
          %s266 = int_to_ptr.vmem [resolvable:$true] %s265
          %271 = dma.hbm_to_vmem [thread:$0]  %s264, 1024, %s266, %s253, 64, 64, 4
        $region36: #{tpu_custom_call.1} parent=23 // pred_fallthru
          _
      $region24: #{tpu_custom_call.1} parent=5 // pred_fallthru
        _
      %p272 = scmp.le.s32.totalorder 1, %s21
      %p273 = scmp.lt.s32.totalorder %s21, 3
      %p274 = pnand %p272, %p273
      %p275 = pneg %p274
      // Predicated region
      $region37: #{tpu_custom_call.1} parent=5 // pred_check
        _
      $region38: #{tpu_custom_call.1} parent=5 // pred_check_branch
        %277 = sbr.rel (%p274) target = $region40
      $region39: #{tpu_custom_call.1} parent=5 // pred_region
        %s278 = ssub.s32 %s21, 1
        %s279 = sand.u32 %s34, 1
        %s280 = scalar_lea.sflag [#allocation3], %s279
        %s281 = sand.u32 %s34, 1
        %s282 = smul.addr %s281, 64
        %s283 = scalar_lea.vmem [#allocation2], %s282
        // Predicated region
        $region41: #{tpu_custom_call.1} parent=39 // pred_check
          %p284 = pneg %p47
        $region42: #{tpu_custom_call.1} parent=39 // pred_check_branch
          %286 = sbr.rel (%p284) target = $region44
        $region43: #{tpu_custom_call.1} parent=39 // pred_region
          %288 = dma.done %s280, 1024
        $region44: #{tpu_custom_call.1} parent=39 // pred_fallthru
          _
        %s289 = sand.u32 %s26, 1
        %s290 = scalar_lea.sflag [#allocation6], %s289
        %s291 = sand.u32 %s60, 1
        %s292 = smul.addr %s291, 64
        %s293 = scalar_lea.vmem [#allocation5], %s292
        // Predicated region
        $region45: #{tpu_custom_call.1} parent=39 // pred_check
          %p294 = pneg %p73
        $region46: #{tpu_custom_call.1} parent=39 // pred_check_branch
          %296 = sbr.rel (%p294) target = $region48
        $region47: #{tpu_custom_call.1} parent=39 // pred_region
          %298 = dma.done %s290, 1024
        $region48: #{tpu_custom_call.1} parent=39 // pred_fallthru
          _
        %s299 = sand.u32 %s26, 1
        %s300 = scalar_lea.sflag [#allocation6], %s299
        %s301 = sand.u32 %s86, 1
        %s302 = smul.addr %s301, 64
        %s303 = scalar_lea.vmem [#allocation7], %s302
        // Predicated region
        $region49: #{tpu_custom_call.1} parent=39 // pred_check
          %p304 = pneg %p99
        $region50: #{tpu_custom_call.1} parent=39 // pred_check_branch
          %306 = sbr.rel (%p304) target = $region52
        $region51: #{tpu_custom_call.1} parent=39 // pred_region
          %308 = dma.done %s300, 1024
        $region52: #{tpu_custom_call.1} parent=39 // pred_fallthru
          _
        // Predicated region
        $region53: #{tpu_custom_call.1} parent=39 // pred_check
          %p309 = pneg %p120
        $region54: #{tpu_custom_call.1} parent=39 // pred_check_branch
          %311 = sbr.rel (%p309) target = $region56
        $region55: #{tpu_custom_call.1} parent=39 // pred_region
          %313 = dma.done [#allocation9], 9216
        $region56: #{tpu_custom_call.1} parent=39 // pred_fallthru
          _
        %s314 = sand.u32 %s34, 1
        %s315 = scalar_lea.sflag [#allocation3], %s314
        %s316 = sand.u32 %s34, 1
        %s317 = smul.addr %s316, 64
        %s318 = scalar_lea.vmem [#allocation2], %s317
        %p319 = pneg %p47
        %p320 = pneg %p44
        %s321 = sand.u32 %s26, 1
        %s322 = scalar_lea.sflag [#allocation6], %s321
        %s323 = sand.u32 %s60, 1
        %s324 = smul.addr %s323, 64
        %s325 = scalar_lea.vmem [#allocation5], %s324
        %p326 = pneg %p73
        %p327 = pneg %p70
        %s328 = sand.u32 %s26, 1
        %s329 = scalar_lea.sflag [#allocation6], %s328
        %s330 = sand.u32 %s86, 1
        %s331 = smul.addr %s330, 64
        %s332 = scalar_lea.vmem [#allocation7], %s331
        %p333 = pneg %p99
        %p334 = pneg %p96
        %p335 = pneg %p120
        %p336 = pneg %p117
        %p337 = pneg %p141
        %p338 = pneg %p138
        %p339 = pneg %p167
        %p340 = pneg %p164
        %s341 = sand.u32 %s154, 1
        %s342 = scalar_lea.sflag [#allocation4], %s341
        %s343 = sand.u32 %s154, 1
        %s344 = smul.addr %s343, 64
        %s345 = scalar_lea.vmem [#allocation10], %s344
        %s346 = smul.u32 2, %s26
        %s347 = smul.u32 2, %s26
        %s348 = smul.u32 2, %s26
        %s349 = smul.u32 2, %s26
        %v351 = vld [vmem:[%s303] sm:$0xf]
        %v352 = vld [vmem:[%s303 + $0x4] sm:$0xf]
        %v353 = vld [vmem:[%s303 + $0x8] sm:$0xf]
        %v354 = vld [vmem:[%s303 + $0xc] sm:$0xf]
        %v355 = vld [vmem:[%s303 + $0x10] sm:$0xf]
        %v356 = vld [vmem:[%s303 + $0x14] sm:$0xf]
        %v357 = vld [vmem:[%s303 + $0x18] sm:$0xf]
        %v358 = vld [vmem:[%s303 + $0x1c] sm:$0xf]
        %v359 = vld [vmem:[%s303 + $0x20] sm:$0xf]
        %v360 = vld [vmem:[%s303 + $0x24] sm:$0xf]
        %v361 = vld [vmem:[%s303 + $0x28] sm:$0xf]
        %v362 = vld [vmem:[%s303 + $0x2c] sm:$0xf]
        %v363 = vld [vmem:[%s303 + $0x30] sm:$0xf]
        %v364 = vld [vmem:[%s303 + $0x34] sm:$0xf]
        %v365 = vld [vmem:[%s303 + $0x38] sm:$0xf]
        %v366 = vld [vmem:[%s303 + $0x3c] sm:$0xf]
        %v367 = vunpack.c.l.bf16 %v351
        %v368 = vunpack.c.l.bf16 %v352
        %v369 = vunpack.c.l.bf16 %v353
        %v370 = vunpack.c.l.bf16 %v354
        %v371 = vunpack.c.l.bf16 %v355
        %v372 = vunpack.c.l.bf16 %v356
        %v373 = vunpack.c.l.bf16 %v357
        %v374 = vunpack.c.l.bf16 %v358
        %v375 = vunpack.c.l.bf16 %v359
        %v376 = vunpack.c.l.bf16 %v360
        %v377 = vunpack.c.l.bf16 %v361
        %v378 = vunpack.c.l.bf16 %v362
        %v379 = vunpack.c.l.bf16 %v363
        %v380 = vunpack.c.l.bf16 %v364
        %v381 = vunpack.c.l.bf16 %v365
        %v382 = vunpack.c.l.bf16 %v366
        %s383 = scalar_lea.vmem [#allocation8], 256
        %v384 = vld [vmem:[%s383] sm:$0xff]
        %v385 = vld [vmem:[%s383 + $0x8] sm:$0xff]
        %v386 = vld [vmem:[%s383 + $0x10] sm:$0xff]
        %v387 = vld [vmem:[%s383 + $0x18] sm:$0xff]
        %v388 = vld [vmem:[%s383 + $0x20] sm:$0xff]
        %v389 = vld [vmem:[%s383 + $0x28] sm:$0xff]
        %v390 = vld [vmem:[%s383 + $0x30] sm:$0xff]
        %v391 = vld [vmem:[%s383 + $0x38] sm:$0xff]
        %v392 = vmul.f32 %v367, %v384
        %v393 = vmul.f32 %v368, %v385
        %v394 = vmul.f32 %v369, %v386
        %v395 = vmul.f32 %v370, %v387
        %v396 = vmul.f32 %v371, %v388
        %v397 = vmul.f32 %v372, %v389
        %v398 = vmul.f32 %v373, %v390
        %v399 = vmul.f32 %v374, %v391
        %v400 = vmul.f32 %v375, %v384
        %v401 = vmul.f32 %v376, %v385
        %v402 = vmul.f32 %v377, %v386
        %v403 = vmul.f32 %v378, %v387
        %v404 = vmul.f32 %v379, %v388
        %v405 = vmul.f32 %v380, %v389
        %v406 = vmul.f32 %v381, %v390
        %v407 = vmul.f32 %v382, %v391
        %408 = vrot.lane.b32.xlu0 %v367, 9
        %v409 = vpop.permute.xlu0 %408
        %410 = vrot.lane.b32.xlu0 %v368, 9
        %v411 = vpop.permute.xlu0 %410
        %412 = vrot.lane.b32.xlu0 %v369, 9
        %v413 = vpop.permute.xlu0 %412
        %414 = vrot.lane.b32.xlu0 %v370, 9
        %v415 = vpop.permute.xlu0 %414
        %416 = vrot.lane.b32.xlu0 %v371, 9
        %v417 = vpop.permute.xlu0 %416
        %418 = vrot.lane.b32.xlu0 %v372, 9
        %v419 = vpop.permute.xlu0 %418
        %420 = vrot.lane.b32.xlu0 %v373, 9
        %v421 = vpop.permute.xlu0 %420
        %422 = vrot.lane.b32.xlu0 %v374, 9
        %v423 = vpop.permute.xlu0 %422
        %424 = vrot.lane.b32.xlu0 %v375, 9
        %v425 = vpop.permute.xlu0 %424
        %426 = vrot.lane.b32.xlu0 %v376, 9
        %v427 = vpop.permute.xlu0 %426
        %428 = vrot.lane.b32.xlu0 %v377, 9
        %v429 = vpop.permute.xlu0 %428
        %430 = vrot.lane.b32.xlu0 %v378, 9
        %v431 = vpop.permute.xlu0 %430
        %432 = vrot.lane.b32.xlu0 %v379, 9
        %v433 = vpop.permute.xlu0 %432
        %434 = vrot.lane.b32.xlu0 %v380, 9
        %v435 = vpop.permute.xlu0 %434
        %436 = vrot.lane.b32.xlu0 %v381, 9
        %v437 = vpop.permute.xlu0 %436
        %438 = vrot.lane.b32.xlu0 %v382, 9
        %v439 = vpop.permute.xlu0 %438
        %v440 = vld [vmem:[#allocation8] sm:$0xff]
        %v441 = vld [vmem:[#allocation8 + $0x8] sm:$0xff]
        %v442 = vld [vmem:[#allocation8 + $0x10] sm:$0xff]
        %v443 = vld [vmem:[#allocation8 + $0x18] sm:$0xff]
        %v444 = vld [vmem:[#allocation8 + $0x20] sm:$0xff]
        %v445 = vld [vmem:[#allocation8 + $0x28] sm:$0xff]
        %v446 = vld [vmem:[#allocation8 + $0x30] sm:$0xff]
        %v447 = vld [vmem:[#allocation8 + $0x38] sm:$0xff]
        %v448 = vmul.f32 %v409, %v440
        %v449 = vmul.f32 %v411, %v441
        %v450 = vmul.f32 %v413, %v442
        %v451 = vmul.f32 %v415, %v443
        %v452 = vmul.f32 %v417, %v444
        %v453 = vmul.f32 %v419, %v445
        %v454 = vmul.f32 %v421, %v446
        %v455 = vmul.f32 %v423, %v447
        %v456 = vmul.f32 %v425, %v440
        %v457 = vmul.f32 %v427, %v441
        %v458 = vmul.f32 %v429, %v442
        %v459 = vmul.f32 %v431, %v443
        %v460 = vmul.f32 %v433, %v444
        %v461 = vmul.f32 %v435, %v445
        %v462 = vmul.f32 %v437, %v446
        %v463 = vmul.f32 %v439, %v447
        %v464 = vadd.f32 %v392, %v448
        %v465 = vadd.f32 %v393, %v449
        %v466 = vadd.f32 %v394, %v450
        %v467 = vadd.f32 %v395, %v451
        %v468 = vadd.f32 %v396, %v452
        %v469 = vadd.f32 %v397, %v453
        %v470 = vadd.f32 %v398, %v454
        %v471 = vadd.f32 %v399, %v455
        %v472 = vadd.f32 %v400, %v456
        %v473 = vadd.f32 %v401, %v457
        %v474 = vadd.f32 %v402, %v458
        %v475 = vadd.f32 %v403, %v459
        %v476 = vadd.f32 %v404, %v460
        %v477 = vadd.f32 %v405, %v461
        %v478 = vadd.f32 %v406, %v462
        %v479 = vadd.f32 %v407, %v463
        %480 = vrot.lane.b32.xlu0 %v367, 8
        %v481 = vpop.permute.xlu0 %480
        %482 = vrot.lane.b32.xlu0 %v368, 8
        %v483 = vpop.permute.xlu0 %482
        %484 = vrot.lane.b32.xlu0 %v369, 8
        %v485 = vpop.permute.xlu0 %484
        %486 = vrot.lane.b32.xlu0 %v370, 8
        %v487 = vpop.permute.xlu0 %486
        %488 = vrot.lane.b32.xlu0 %v371, 8
        %v489 = vpop.permute.xlu0 %488
        %490 = vrot.lane.b32.xlu0 %v372, 8
        %v491 = vpop.permute.xlu0 %490
        %492 = vrot.lane.b32.xlu0 %v373, 8
        %v493 = vpop.permute.xlu0 %492
        %494 = vrot.lane.b32.xlu0 %v374, 8
        %v495 = vpop.permute.xlu0 %494
        %496 = vrot.lane.b32.xlu0 %v375, 8
        %v497 = vpop.permute.xlu0 %496
        %498 = vrot.lane.b32.xlu0 %v376, 8
        %v499 = vpop.permute.xlu0 %498
        %500 = vrot.lane.b32.xlu0 %v377, 8
        %v501 = vpop.permute.xlu0 %500
        %502 = vrot.lane.b32.xlu0 %v378, 8
        %v503 = vpop.permute.xlu0 %502
        %504 = vrot.lane.b32.xlu0 %v379, 8
        %v505 = vpop.permute.xlu0 %504
        %506 = vrot.lane.b32.xlu0 %v380, 8
        %v507 = vpop.permute.xlu0 %506
        %508 = vrot.lane.b32.xlu0 %v381, 8
        %v509 = vpop.permute.xlu0 %508
        %510 = vrot.lane.b32.xlu0 %v382, 8
        %v511 = vpop.permute.xlu0 %510
        %s512 = scalar_lea.vmem [#allocation8], 64
        %v513 = vld [vmem:[%s512] sm:$0xff]
        %v514 = vld [vmem:[%s512 + $0x8] sm:$0xff]
        %v515 = vld [vmem:[%s512 + $0x10] sm:$0xff]
        %v516 = vld [vmem:[%s512 + $0x18] sm:$0xff]
        %v517 = vld [vmem:[%s512 + $0x20] sm:$0xff]
        %v518 = vld [vmem:[%s512 + $0x28] sm:$0xff]
        %v519 = vld [vmem:[%s512 + $0x30] sm:$0xff]
        %v520 = vld [vmem:[%s512 + $0x38] sm:$0xff]
        %v521 = vmul.f32 %v481, %v513
        %v522 = vmul.f32 %v483, %v514
        %v523 = vmul.f32 %v485, %v515
        %v524 = vmul.f32 %v487, %v516
        %v525 = vmul.f32 %v489, %v517
        %v526 = vmul.f32 %v491, %v518
        %v527 = vmul.f32 %v493, %v519
        %v528 = vmul.f32 %v495, %v520
        %v529 = vmul.f32 %v497, %v513
        %v530 = vmul.f32 %v499, %v514
        %v531 = vmul.f32 %v501, %v515
        %v532 = vmul.f32 %v503, %v516
        %v533 = vmul.f32 %v505, %v517
        %v534 = vmul.f32 %v507, %v518
        %v535 = vmul.f32 %v509, %v519
        %v536 = vmul.f32 %v511, %v520
        %v537 = vadd.f32 %v464, %v521
        %v538 = vadd.f32 %v465, %v522
        %v539 = vadd.f32 %v466, %v523
        %v540 = vadd.f32 %v467, %v524
        %v541 = vadd.f32 %v468, %v525
        %v542 = vadd.f32 %v469, %v526
        %v543 = vadd.f32 %v470, %v527
        %v544 = vadd.f32 %v471, %v528
        %v545 = vadd.f32 %v472, %v529
        %v546 = vadd.f32 %v473, %v530
        %v547 = vadd.f32 %v474, %v531
        %v548 = vadd.f32 %v475, %v532
        %v549 = vadd.f32 %v476, %v533
        %v550 = vadd.f32 %v477, %v534
        %v551 = vadd.f32 %v478, %v535
        %v552 = vadd.f32 %v479, %v536
        %553 = vrot.lane.b32.xlu0 %v367, 7
        %v554 = vpop.permute.xlu0 %553
        %555 = vrot.lane.b32.xlu0 %v368, 7
        %v556 = vpop.permute.xlu0 %555
        %557 = vrot.lane.b32.xlu0 %v369, 7
        %v558 = vpop.permute.xlu0 %557
        %559 = vrot.lane.b32.xlu0 %v370, 7
        %v560 = vpop.permute.xlu0 %559
        %561 = vrot.lane.b32.xlu0 %v371, 7
        %v562 = vpop.permute.xlu0 %561
        %563 = vrot.lane.b32.xlu0 %v372, 7
        %v564 = vpop.permute.xlu0 %563
        %565 = vrot.lane.b32.xlu0 %v373, 7
        %v566 = vpop.permute.xlu0 %565
        %567 = vrot.lane.b32.xlu0 %v374, 7
        %v568 = vpop.permute.xlu0 %567
        %569 = vrot.lane.b32.xlu0 %v375, 7
        %v570 = vpop.permute.xlu0 %569
        %571 = vrot.lane.b32.xlu0 %v376, 7
        %v572 = vpop.permute.xlu0 %571
        %573 = vrot.lane.b32.xlu0 %v377, 7
        %v574 = vpop.permute.xlu0 %573
        %575 = vrot.lane.b32.xlu0 %v378, 7
        %v576 = vpop.permute.xlu0 %575
        %577 = vrot.lane.b32.xlu0 %v379, 7
        %v578 = vpop.permute.xlu0 %577
        %579 = vrot.lane.b32.xlu0 %v380, 7
        %v580 = vpop.permute.xlu0 %579
        %581 = vrot.lane.b32.xlu0 %v381, 7
        %v582 = vpop.permute.xlu0 %581
        %583 = vrot.lane.b32.xlu0 %v382, 7
        %v584 = vpop.permute.xlu0 %583
        %s585 = scalar_lea.vmem [#allocation8], 128
        %v586 = vld [vmem:[%s585] sm:$0xff]
        %v587 = vld [vmem:[%s585 + $0x8] sm:$0xff]
        %v588 = vld [vmem:[%s585 + $0x10] sm:$0xff]
        %v589 = vld [vmem:[%s585 + $0x18] sm:$0xff]
        %v590 = vld [vmem:[%s585 + $0x20] sm:$0xff]
        %v591 = vld [vmem:[%s585 + $0x28] sm:$0xff]
        %v592 = vld [vmem:[%s585 + $0x30] sm:$0xff]
        %v593 = vld [vmem:[%s585 + $0x38] sm:$0xff]
        %v594 = vmul.f32 %v554, %v586
        %v595 = vmul.f32 %v556, %v587
        %v596 = vmul.f32 %v558, %v588
        %v597 = vmul.f32 %v560, %v589
        %v598 = vmul.f32 %v562, %v590
        %v599 = vmul.f32 %v564, %v591
        %v600 = vmul.f32 %v566, %v592
        %v601 = vmul.f32 %v568, %v593
        %v602 = vmul.f32 %v570, %v586
        %v603 = vmul.f32 %v572, %v587
        %v604 = vmul.f32 %v574, %v588
        %v605 = vmul.f32 %v576, %v589
        %v606 = vmul.f32 %v578, %v590
        %v607 = vmul.f32 %v580, %v591
        %v608 = vmul.f32 %v582, %v592
        %v609 = vmul.f32 %v584, %v593
        %v610 = vadd.f32 %v537, %v594
        %v611 = vadd.f32 %v538, %v595
        %v612 = vadd.f32 %v539, %v596
        %v613 = vadd.f32 %v540, %v597
        %v614 = vadd.f32 %v541, %v598
        %v615 = vadd.f32 %v542, %v599
        %v616 = vadd.f32 %v543, %v600
        %v617 = vadd.f32 %v544, %v601
        %v618 = vadd.f32 %v545, %v602
        %v619 = vadd.f32 %v546, %v603
        %v620 = vadd.f32 %v547, %v604
        %v621 = vadd.f32 %v548, %v605
        %v622 = vadd.f32 %v549, %v606
        %v623 = vadd.f32 %v550, %v607
        %v624 = vadd.f32 %v551, %v608
        %v625 = vadd.f32 %v552, %v609
        %626 = vrot.lane.b32.xlu0 %v367, 1
        %v627 = vpop.permute.xlu0 %626
        %628 = vrot.lane.b32.xlu0 %v368, 1
        %v629 = vpop.permute.xlu0 %628
        %630 = vrot.lane.b32.xlu0 %v369, 1
        %v631 = vpop.permute.xlu0 %630
        %632 = vrot.lane.b32.xlu0 %v370, 1
        %v633 = vpop.permute.xlu0 %632
        %634 = vrot.lane.b32.xlu0 %v371, 1
        %v635 = vpop.permute.xlu0 %634
        %636 = vrot.lane.b32.xlu0 %v372, 1
        %v637 = vpop.permute.xlu0 %636
        %638 = vrot.lane.b32.xlu0 %v373, 1
        %v639 = vpop.permute.xlu0 %638
        %640 = vrot.lane.b32.xlu0 %v374, 1
        %v641 = vpop.permute.xlu0 %640
        %642 = vrot.lane.b32.xlu0 %v375, 1
        %v643 = vpop.permute.xlu0 %642
        %644 = vrot.lane.b32.xlu0 %v376, 1
        %v645 = vpop.permute.xlu0 %644
        %646 = vrot.lane.b32.xlu0 %v377, 1
        %v647 = vpop.permute.xlu0 %646
        %648 = vrot.lane.b32.xlu0 %v378, 1
        %v649 = vpop.permute.xlu0 %648
        %650 = vrot.lane.b32.xlu0 %v379, 1
        %v651 = vpop.permute.xlu0 %650
        %652 = vrot.lane.b32.xlu0 %v380, 1
        %v653 = vpop.permute.xlu0 %652
        %654 = vrot.lane.b32.xlu0 %v381, 1
        %v655 = vpop.permute.xlu0 %654
        %656 = vrot.lane.b32.xlu0 %v382, 1
        %v657 = vpop.permute.xlu0 %656
        %s658 = scalar_lea.vmem [#allocation8], 192
        %v659 = vld [vmem:[%s658] sm:$0xff]
        %v660 = vld [vmem:[%s658 + $0x8] sm:$0xff]
        %v661 = vld [vmem:[%s658 + $0x10] sm:$0xff]
        %v662 = vld [vmem:[%s658 + $0x18] sm:$0xff]
        %v663 = vld [vmem:[%s658 + $0x20] sm:$0xff]
        %v664 = vld [vmem:[%s658 + $0x28] sm:$0xff]
        %v665 = vld [vmem:[%s658 + $0x30] sm:$0xff]
        %v666 = vld [vmem:[%s658 + $0x38] sm:$0xff]
        %v667 = vmul.f32 %v627, %v659
        %v668 = vmul.f32 %v629, %v660
        %v669 = vmul.f32 %v631, %v661
        %v670 = vmul.f32 %v633, %v662
        %v671 = vmul.f32 %v635, %v663
        %v672 = vmul.f32 %v637, %v664
        %v673 = vmul.f32 %v639, %v665
        %v674 = vmul.f32 %v641, %v666
        %v675 = vmul.f32 %v643, %v659
        %v676 = vmul.f32 %v645, %v660
        %v677 = vmul.f32 %v647, %v661
        %v678 = vmul.f32 %v649, %v662
        %v679 = vmul.f32 %v651, %v663
        %v680 = vmul.f32 %v653, %v664
        %v681 = vmul.f32 %v655, %v665
        %v682 = vmul.f32 %v657, %v666
        %v683 = vadd.f32 %v610, %v667
        %v684 = vadd.f32 %v611, %v668
        %v685 = vadd.f32 %v612, %v669
        %v686 = vadd.f32 %v613, %v670
        %v687 = vadd.f32 %v614, %v671
        %v688 = vadd.f32 %v615, %v672
        %v689 = vadd.f32 %v616, %v673
        %v690 = vadd.f32 %v617, %v674
        %v691 = vadd.f32 %v618, %v675
        %v692 = vadd.f32 %v619, %v676
        %v693 = vadd.f32 %v620, %v677
        %v694 = vadd.f32 %v621, %v678
        %v695 = vadd.f32 %v622, %v679
        %v696 = vadd.f32 %v623, %v680
        %v697 = vadd.f32 %v624, %v681
        %v698 = vadd.f32 %v625, %v682
        %699 = vrot.lane.b32.xlu0 %v367, 127
        %v700 = vpop.permute.xlu0 %699
        %701 = vrot.lane.b32.xlu0 %v368, 127
        %v702 = vpop.permute.xlu0 %701
        %703 = vrot.lane.b32.xlu0 %v369, 127
        %v704 = vpop.permute.xlu0 %703
        %705 = vrot.lane.b32.xlu0 %v370, 127
        %v706 = vpop.permute.xlu0 %705
        %707 = vrot.lane.b32.xlu0 %v371, 127
        %v708 = vpop.permute.xlu0 %707
        %709 = vrot.lane.b32.xlu0 %v372, 127
        %v710 = vpop.permute.xlu0 %709
        %711 = vrot.lane.b32.xlu0 %v373, 127
        %v712 = vpop.permute.xlu0 %711
        %713 = vrot.lane.b32.xlu0 %v374, 127
        %v714 = vpop.permute.xlu0 %713
        %715 = vrot.lane.b32.xlu0 %v375, 127
        %v716 = vpop.permute.xlu0 %715
        %717 = vrot.lane.b32.xlu0 %v376, 127
        %v718 = vpop.permute.xlu0 %717
        %719 = vrot.lane.b32.xlu0 %v377, 127
        %v720 = vpop.permute.xlu0 %719
        %721 = vrot.lane.b32.xlu0 %v378, 127
        %v722 = vpop.permute.xlu0 %721
        %723 = vrot.lane.b32.xlu0 %v379, 127
        %v724 = vpop.permute.xlu0 %723
        %725 = vrot.lane.b32.xlu0 %v380, 127
        %v726 = vpop.permute.xlu0 %725
        %727 = vrot.lane.b32.xlu0 %v381, 127
        %v728 = vpop.permute.xlu0 %727
        %729 = vrot.lane.b32.xlu0 %v382, 127
        %v730 = vpop.permute.xlu0 %729
        %s731 = scalar_lea.vmem [#allocation8], 320
        %v732 = vld [vmem:[%s731] sm:$0xff]
        %v733 = vld [vmem:[%s731 + $0x8] sm:$0xff]
        %v734 = vld [vmem:[%s731 + $0x10] sm:$0xff]
        %v735 = vld [vmem:[%s731 + $0x18] sm:$0xff]
        %v736 = vld [vmem:[%s731 + $0x20] sm:$0xff]
        %v737 = vld [vmem:[%s731 + $0x28] sm:$0xff]
        %v738 = vld [vmem:[%s731 + $0x30] sm:$0xff]
        %v739 = vld [vmem:[%s731 + $0x38] sm:$0xff]
        %v740 = vmul.f32 %v700, %v732
        %v741 = vmul.f32 %v702, %v733
        %v742 = vmul.f32 %v704, %v734
        %v743 = vmul.f32 %v706, %v735
        %v744 = vmul.f32 %v708, %v736
        %v745 = vmul.f32 %v710, %v737
        %v746 = vmul.f32 %v712, %v738
        %v747 = vmul.f32 %v714, %v739
        %v748 = vmul.f32 %v716, %v732
        %v749 = vmul.f32 %v718, %v733
        %v750 = vmul.f32 %v720, %v734
        %v751 = vmul.f32 %v722, %v735
        %v752 = vmul.f32 %v724, %v736
        %v753 = vmul.f32 %v726, %v737
        %v754 = vmul.f32 %v728, %v738
        %v755 = vmul.f32 %v730, %v739
        %v756 = vadd.f32 %v683, %v740
        %v757 = vadd.f32 %v684, %v741
        %v758 = vadd.f32 %v685, %v742
        %v759 = vadd.f32 %v686, %v743
        %v760 = vadd.f32 %v687, %v744
        %v761 = vadd.f32 %v688, %v745
        %v762 = vadd.f32 %v689, %v746
        %v763 = vadd.f32 %v690, %v747
        %v764 = vadd.f32 %v691, %v748
        %v765 = vadd.f32 %v692, %v749
        %v766 = vadd.f32 %v693, %v750
        %v767 = vadd.f32 %v694, %v751
        %v768 = vadd.f32 %v695, %v752
        %v769 = vadd.f32 %v696, %v753
        %v770 = vadd.f32 %v697, %v754
        %v771 = vadd.f32 %v698, %v755
        %772 = vrot.lane.b32.xlu0 %v367, 121
        %v773 = vpop.permute.xlu0 %772
        %774 = vrot.lane.b32.xlu0 %v368, 121
        %v775 = vpop.permute.xlu0 %774
        %776 = vrot.lane.b32.xlu0 %v369, 121
        %v777 = vpop.permute.xlu0 %776
        %778 = vrot.lane.b32.xlu0 %v370, 121
        %v779 = vpop.permute.xlu0 %778
        %780 = vrot.lane.b32.xlu0 %v371, 121
        %v781 = vpop.permute.xlu0 %780
        %782 = vrot.lane.b32.xlu0 %v372, 121
        %v783 = vpop.permute.xlu0 %782
        %784 = vrot.lane.b32.xlu0 %v373, 121
        %v785 = vpop.permute.xlu0 %784
        %786 = vrot.lane.b32.xlu0 %v374, 121
        %v787 = vpop.permute.xlu0 %786
        %788 = vrot.lane.b32.xlu0 %v375, 121
        %v789 = vpop.permute.xlu0 %788
        %790 = vrot.lane.b32.xlu0 %v376, 121
        %v791 = vpop.permute.xlu0 %790
        %792 = vrot.lane.b32.xlu0 %v377, 121
        %v793 = vpop.permute.xlu0 %792
        %794 = vrot.lane.b32.xlu0 %v378, 121
        %v795 = vpop.permute.xlu0 %794
        %796 = vrot.lane.b32.xlu0 %v379, 121
        %v797 = vpop.permute.xlu0 %796
        %798 = vrot.lane.b32.xlu0 %v380, 121
        %v799 = vpop.permute.xlu0 %798
        %800 = vrot.lane.b32.xlu0 %v381, 121
        %v801 = vpop.permute.xlu0 %800
        %802 = vrot.lane.b32.xlu0 %v382, 121
        %v803 = vpop.permute.xlu0 %802
        %s804 = scalar_lea.vmem [#allocation8], 384
        %v805 = vld [vmem:[%s804] sm:$0xff]
        %v806 = vld [vmem:[%s804 + $0x8] sm:$0xff]
        %v807 = vld [vmem:[%s804 + $0x10] sm:$0xff]
        %v808 = vld [vmem:[%s804 + $0x18] sm:$0xff]
        %v809 = vld [vmem:[%s804 + $0x20] sm:$0xff]
        %v810 = vld [vmem:[%s804 + $0x28] sm:$0xff]
        %v811 = vld [vmem:[%s804 + $0x30] sm:$0xff]
        %v812 = vld [vmem:[%s804 + $0x38] sm:$0xff]
        %v813 = vmul.f32 %v773, %v805
        %v814 = vmul.f32 %v775, %v806
        %v815 = vmul.f32 %v777, %v807
        %v816 = vmul.f32 %v779, %v808
        %v817 = vmul.f32 %v781, %v809
        %v818 = vmul.f32 %v783, %v810
        %v819 = vmul.f32 %v785, %v811
        %v820 = vmul.f32 %v787, %v812
        %v821 = vmul.f32 %v789, %v805
        %v822 = vmul.f32 %v791, %v806
        %v823 = vmul.f32 %v793, %v807
        %v824 = vmul.f32 %v795, %v808
        %v825 = vmul.f32 %v797, %v809
        %v826 = vmul.f32 %v799, %v810
        %v827 = vmul.f32 %v801, %v811
        %v828 = vmul.f32 %v803, %v812
        %v829 = vadd.f32 %v756, %v813
        %v830 = vadd.f32 %v757, %v814
        %v831 = vadd.f32 %v758, %v815
        %v832 = vadd.f32 %v759, %v816
        %v833 = vadd.f32 %v760, %v817
        %v834 = vadd.f32 %v761, %v818
        %v835 = vadd.f32 %v762, %v819
        %v836 = vadd.f32 %v763, %v820
        %v837 = vadd.f32 %v764, %v821
        %v838 = vadd.f32 %v765, %v822
        %v839 = vadd.f32 %v766, %v823
        %v840 = vadd.f32 %v767, %v824
        %v841 = vadd.f32 %v768, %v825
        %v842 = vadd.f32 %v769, %v826
        %v843 = vadd.f32 %v770, %v827
        %v844 = vadd.f32 %v771, %v828
        %845 = vrot.lane.b32.xlu0 %v367, 120
        %v846 = vpop.permute.xlu0 %845
        %847 = vrot.lane.b32.xlu0 %v368, 120
        %v848 = vpop.permute.xlu0 %847
        %849 = vrot.lane.b32.xlu0 %v369, 120
        %v850 = vpop.permute.xlu0 %849
        %851 = vrot.lane.b32.xlu0 %v370, 120
        %v852 = vpop.permute.xlu0 %851
        %853 = vrot.lane.b32.xlu0 %v371, 120
        %v854 = vpop.permute.xlu0 %853
        %855 = vrot.lane.b32.xlu0 %v372, 120
        %v856 = vpop.permute.xlu0 %855
        %857 = vrot.lane.b32.xlu0 %v373, 120
        %v858 = vpop.permute.xlu0 %857
        %859 = vrot.lane.b32.xlu0 %v374, 120
        %v860 = vpop.permute.xlu0 %859
        %861 = vrot.lane.b32.xlu0 %v375, 120
        %v862 = vpop.permute.xlu0 %861
        %863 = vrot.lane.b32.xlu0 %v376, 120
        %v864 = vpop.permute.xlu0 %863
        %865 = vrot.lane.b32.xlu0 %v377, 120
        %v866 = vpop.permute.xlu0 %865
        %867 = vrot.lane.b32.xlu0 %v378, 120
        %v868 = vpop.permute.xlu0 %867
        %869 = vrot.lane.b32.xlu0 %v379, 120
        %v870 = vpop.permute.xlu0 %869
        %871 = vrot.lane.b32.xlu0 %v380, 120
        %v872 = vpop.permute.xlu0 %871
        %873 = vrot.lane.b32.xlu0 %v381, 120
        %v874 = vpop.permute.xlu0 %873
        %875 = vrot.lane.b32.xlu0 %v382, 120
        %v876 = vpop.permute.xlu0 %875
        %s877 = scalar_lea.vmem [#allocation8], 448
        %v878 = vld [vmem:[%s877] sm:$0xff]
        %v879 = vld [vmem:[%s877 + $0x8] sm:$0xff]
        %v880 = vld [vmem:[%s877 + $0x10] sm:$0xff]
        %v881 = vld [vmem:[%s877 + $0x18] sm:$0xff]
        %v882 = vld [vmem:[%s877 + $0x20] sm:$0xff]
        %v883 = vld [vmem:[%s877 + $0x28] sm:$0xff]
        %v884 = vld [vmem:[%s877 + $0x30] sm:$0xff]
        %v885 = vld [vmem:[%s877 + $0x38] sm:$0xff]
        %v886 = vmul.f32 %v846, %v878
        %v887 = vmul.f32 %v848, %v879
        %v888 = vmul.f32 %v850, %v880
        %v889 = vmul.f32 %v852, %v881
        %v890 = vmul.f32 %v854, %v882
        %v891 = vmul.f32 %v856, %v883
        %v892 = vmul.f32 %v858, %v884
        %v893 = vmul.f32 %v860, %v885
        %v894 = vmul.f32 %v862, %v878
        %v895 = vmul.f32 %v864, %v879
        %v896 = vmul.f32 %v866, %v880
        %v897 = vmul.f32 %v868, %v881
        %v898 = vmul.f32 %v870, %v882
        %v899 = vmul.f32 %v872, %v883
        %v900 = vmul.f32 %v874, %v884
        %v901 = vmul.f32 %v876, %v885
        %v902 = vadd.f32 %v829, %v886
        %v903 = vadd.f32 %v830, %v887
        %v904 = vadd.f32 %v831, %v888
        %v905 = vadd.f32 %v832, %v889
        %v906 = vadd.f32 %v833, %v890
        %v907 = vadd.f32 %v834, %v891
        %v908 = vadd.f32 %v835, %v892
        %v909 = vadd.f32 %v836, %v893
        %v910 = vadd.f32 %v837, %v894
        %v911 = vadd.f32 %v838, %v895
        %v912 = vadd.f32 %v839, %v896
        %v913 = vadd.f32 %v840, %v897
        %v914 = vadd.f32 %v841, %v898
        %v915 = vadd.f32 %v842, %v899
        %v916 = vadd.f32 %v843, %v900
        %v917 = vadd.f32 %v844, %v901
        %918 = vrot.lane.b32.xlu0 %v367, 119
        %v919 = vpop.permute.xlu0 %918
        %920 = vrot.lane.b32.xlu0 %v368, 119
        %v921 = vpop.permute.xlu0 %920
        %922 = vrot.lane.b32.xlu0 %v369, 119
        %v923 = vpop.permute.xlu0 %922
        %924 = vrot.lane.b32.xlu0 %v370, 119
        %v925 = vpop.permute.xlu0 %924
        %926 = vrot.lane.b32.xlu0 %v371, 119
        %v927 = vpop.permute.xlu0 %926
        %928 = vrot.lane.b32.xlu0 %v372, 119
        %v929 = vpop.permute.xlu0 %928
        %930 = vrot.lane.b32.xlu0 %v373, 119
        %v931 = vpop.permute.xlu0 %930
        %932 = vrot.lane.b32.xlu0 %v374, 119
        %v933 = vpop.permute.xlu0 %932
        %934 = vrot.lane.b32.xlu0 %v375, 119
        %v935 = vpop.permute.xlu0 %934
        %936 = vrot.lane.b32.xlu0 %v376, 119
        %v937 = vpop.permute.xlu0 %936
        %938 = vrot.lane.b32.xlu0 %v377, 119
        %v939 = vpop.permute.xlu0 %938
        %940 = vrot.lane.b32.xlu0 %v378, 119
        %v941 = vpop.permute.xlu0 %940
        %942 = vrot.lane.b32.xlu0 %v379, 119
        %v943 = vpop.permute.xlu0 %942
        %944 = vrot.lane.b32.xlu0 %v380, 119
        %v945 = vpop.permute.xlu0 %944
        %946 = vrot.lane.b32.xlu0 %v381, 119
        %v947 = vpop.permute.xlu0 %946
        %948 = vrot.lane.b32.xlu0 %v382, 119
        %v949 = vpop.permute.xlu0 %948
        %s950 = scalar_lea.vmem [#allocation8], 512
        %v951 = vld [vmem:[%s950] sm:$0xff]
        %v952 = vld [vmem:[%s950 + $0x8] sm:$0xff]
        %v953 = vld [vmem:[%s950 + $0x10] sm:$0xff]
        %v954 = vld [vmem:[%s950 + $0x18] sm:$0xff]
        %v955 = vld [vmem:[%s950 + $0x20] sm:$0xff]
        %v956 = vld [vmem:[%s950 + $0x28] sm:$0xff]
        %v957 = vld [vmem:[%s950 + $0x30] sm:$0xff]
        %v958 = vld [vmem:[%s950 + $0x38] sm:$0xff]
        %v959 = vmul.f32 %v919, %v951
        %v960 = vmul.f32 %v921, %v952
        %v961 = vmul.f32 %v923, %v953
        %v962 = vmul.f32 %v925, %v954
        %v963 = vmul.f32 %v927, %v955
        %v964 = vmul.f32 %v929, %v956
        %v965 = vmul.f32 %v931, %v957
        %v966 = vmul.f32 %v933, %v958
        %v967 = vmul.f32 %v935, %v951
        %v968 = vmul.f32 %v937, %v952
        %v969 = vmul.f32 %v939, %v953
        %v970 = vmul.f32 %v941, %v954
        %v971 = vmul.f32 %v943, %v955
        %v972 = vmul.f32 %v945, %v956
        %v973 = vmul.f32 %v947, %v957
        %v974 = vmul.f32 %v949, %v958
        %v975 = vadd.f32 %v902, %v959
        %v976 = vadd.f32 %v903, %v960
        %v977 = vadd.f32 %v904, %v961
        %v978 = vadd.f32 %v905, %v962
        %v979 = vadd.f32 %v906, %v963
        %v980 = vadd.f32 %v907, %v964
        %v981 = vadd.f32 %v908, %v965
        %v982 = vadd.f32 %v909, %v966
        %v983 = vadd.f32 %v910, %v967
        %v984 = vadd.f32 %v911, %v968
        %v985 = vadd.f32 %v912, %v969
        %v986 = vadd.f32 %v913, %v970
        %v987 = vadd.f32 %v914, %v971
        %v988 = vadd.f32 %v915, %v972
        %v989 = vadd.f32 %v916, %v973
        %v990 = vadd.f32 %v917, %v974
        %v991 = vld [vmem:[%s283] sm:$0xf]
        %v992 = vld [vmem:[%s283 + $0x4] sm:$0xf]
        %v993 = vld [vmem:[%s283 + $0x8] sm:$0xf]
        %v994 = vld [vmem:[%s283 + $0xc] sm:$0xf]
        %v995 = vld [vmem:[%s283 + $0x10] sm:$0xf]
        %v996 = vld [vmem:[%s283 + $0x14] sm:$0xf]
        %v997 = vld [vmem:[%s283 + $0x18] sm:$0xf]
        %v998 = vld [vmem:[%s283 + $0x1c] sm:$0xf]
        %v999 = vld [vmem:[%s283 + $0x20] sm:$0xf]
        %v1000 = vld [vmem:[%s283 + $0x24] sm:$0xf]
        %v1001 = vld [vmem:[%s283 + $0x28] sm:$0xf]
        %v1002 = vld [vmem:[%s283 + $0x2c] sm:$0xf]
        %v1003 = vld [vmem:[%s283 + $0x30] sm:$0xf]
        %v1004 = vld [vmem:[%s283 + $0x34] sm:$0xf]
        %v1005 = vld [vmem:[%s283 + $0x38] sm:$0xf]
        %v1006 = vld [vmem:[%s283 + $0x3c] sm:$0xf]
        %v1007 = vunpack.c.l.bf16 %v991
        %v1008 = vunpack.c.l.bf16 %v992
        %v1009 = vunpack.c.l.bf16 %v993
        %v1010 = vunpack.c.l.bf16 %v994
        %v1011 = vunpack.c.l.bf16 %v995
        %v1012 = vunpack.c.l.bf16 %v996
        %v1013 = vunpack.c.l.bf16 %v997
        %v1014 = vunpack.c.l.bf16 %v998
        %v1015 = vunpack.c.l.bf16 %v999
        %v1016 = vunpack.c.l.bf16 %v1000
        %v1017 = vunpack.c.l.bf16 %v1001
        %v1018 = vunpack.c.l.bf16 %v1002
        %v1019 = vunpack.c.l.bf16 %v1003
        %v1020 = vunpack.c.l.bf16 %v1004
        %v1021 = vunpack.c.l.bf16 %v1005
        %v1022 = vunpack.c.l.bf16 %v1006
        %v1023 = vmul.f32 %v1007, 0.17675781
        %v1024 = vmul.f32 %v1008, 0.17675781
        %v1025 = vmul.f32 %v1009, 0.17675781
        %v1026 = vmul.f32 %v1010, 0.17675781
        %v1027 = vmul.f32 %v1011, 0.17675781
        %v1028 = vmul.f32 %v1012, 0.17675781
        %v1029 = vmul.f32 %v1013, 0.17675781
        %v1030 = vmul.f32 %v1014, 0.17675781
        %v1031 = vmul.f32 %v1015, 0.17675781
        %v1032 = vmul.f32 %v1016, 0.17675781
        %v1033 = vmul.f32 %v1017, 0.17675781
        %v1034 = vmul.f32 %v1018, 0.17675781
        %v1035 = vmul.f32 %v1019, 0.17675781
        %v1036 = vmul.f32 %v1020, 0.17675781
        %v1037 = vmul.f32 %v1021, 0.17675781
        %v1038 = vmul.f32 %v1022, 0.17675781
        %v1039 = vpack.c.bf16 %v1023, %v1023
        %v1040 = vpack.c.bf16 %v1024, %v1024
        %v1041 = vpack.c.bf16 %v1025, %v1025
        %v1042 = vpack.c.bf16 %v1026, %v1026
        %v1043 = vpack.c.bf16 %v1027, %v1027
        %v1044 = vpack.c.bf16 %v1028, %v1028
        %v1045 = vpack.c.bf16 %v1029, %v1029
        %v1046 = vpack.c.bf16 %v1030, %v1030
        %v1047 = vpack.c.bf16 %v1031, %v1031
        %v1048 = vpack.c.bf16 %v1032, %v1032
        %v1049 = vpack.c.bf16 %v1033, %v1033
        %v1050 = vpack.c.bf16 %v1034, %v1034
        %v1051 = vpack.c.bf16 %v1035, %v1035
        %v1052 = vpack.c.bf16 %v1036, %v1036
        %v1053 = vpack.c.bf16 %v1037, %v1037
        %v1054 = vpack.c.bf16 %v1038, %v1038
        %v1055 = vld [vmem:[%s293] sm:$0xf]
        %v1056 = vld [vmem:[%s293 + $0x4] sm:$0xf]
        %v1057 = vld [vmem:[%s293 + $0x8] sm:$0xf]
        %v1058 = vld [vmem:[%s293 + $0xc] sm:$0xf]
        %v1059 = vld [vmem:[%s293 + $0x10] sm:$0xf]
        %v1060 = vld [vmem:[%s293 + $0x14] sm:$0xf]
        %v1061 = vld [vmem:[%s293 + $0x18] sm:$0xf]
        %v1062 = vld [vmem:[%s293 + $0x1c] sm:$0xf]
        %v1063 = vld [vmem:[%s293 + $0x20] sm:$0xf]
        %v1064 = vld [vmem:[%s293 + $0x24] sm:$0xf]
        %v1065 = vld [vmem:[%s293 + $0x28] sm:$0xf]
        %v1066 = vld [vmem:[%s293 + $0x2c] sm:$0xf]
        %v1067 = vld [vmem:[%s293 + $0x30] sm:$0xf]
        %v1068 = vld [vmem:[%s293 + $0x34] sm:$0xf]
        %v1069 = vld [vmem:[%s293 + $0x38] sm:$0xf]
        %v1070 = vld [vmem:[%s293 + $0x3c] sm:$0xf]
        %v1075 = vunpack.c.l.b16 %v1055
        %v1076 = vunpack.c.l.b16 %v1056
        %v1077 = vunpack.c.l.b16 %v1057
        %v1078 = vunpack.c.l.b16 %v1058
        %v1079 = vpack.c.b16 %v1076, %v1075
        %v1080 = vpack.c.b16 %v1078, %v1077
        %1083 = vxpose.xlu0.c.b16.start [1/8] %v1079, 128
        %1084 = vxpose.xlu0.c.b16.cont [2/8] %v1080, 128
        %1085 = vxpose.xlu0.c.b16.cont [3/8] 0, 128
        %1086 = vxpose.xlu0.c.b16.cont [4/8] 0, 128
        %1087 = vxpose.xlu0.c.b16.cont [5/8] 0, 128
        %1088 = vxpose.xlu0.c.b16.cont [6/8] 0, 128
        %1089 = vxpose.xlu0.c.b16.cont [7/8] 0, 128
        %1090 = vxpose.xlu0.c.b16.end [8/8] 0, 128
        %v1091 = vpop.trf.xlu0
        %v1092 = vpop.trf.xlu0
        %v1093 = vpop.trf.xlu0
        %v1094 = vpop.trf.xlu0
        %v1095 = vpop.trf.xlu0
        %v1096 = vpop.trf.xlu0
        %v1097 = vpop.trf.xlu0
        %v1098 = vpop.trf.xlu0
        %v1103 = vunpack.c.l.b16 %v1039
        %v1104 = vunpack.c.l.b16 %v1040
        %v1105 = vunpack.c.l.b16 %v1041
        %v1106 = vunpack.c.l.b16 %v1042
        %v1107 = vpack.c.b16 %v1104, %v1103
        %v1108 = vpack.c.b16 %v1106, %v1105
        %vm1111 = vcmask 261120
        %v1113 = vsel %vm1111, %v1091, 0
        %v1116 = vsel %vm1111, %v1092, 0
        %v1119 = vsel %vm1111, %v1093, 0
        %v1122 = vsel %vm1111, %v1094, 0
        %v1125 = vsel %vm1111, %v1095, 0
        %v1128 = vsel %vm1111, %v1096, 0
        %v1131 = vsel %vm1111, %v1097, 0
        %v1134 = vsel %vm1111, %v1098, 0
        %1136 = vmatpush.bf16.msra.mxu0 0
        %1137 = vmatpush.bf16.msra.mxu0 0
        %1138 = vmatpush.bf16.msra.mxu0 0
        %1139 = vmatpush.bf16.msra.mxu0 0
        %1140 = vmatpush.bf16.msra.mxu0 0
        %1141 = vmatpush.bf16.msra.mxu0 0
        %1142 = vmatpush.bf16.msra.mxu0 %v1108
        %1143 = vmatpush.bf16.msra.mxu0 %v1107
        %1144 = vmatmul.bf16.gmra.mxu0 %v1113
        %v1145 = vpop.f32.mrf.mxu0
        %v1146 = vadd.f32 0.0, %v1145
        %v1147 = vpop.f32.mrf.mxu0
        %v1148 = vadd.f32 0.0, %v1147
        %1149 = vmatmul.bf16.gmra.mxu0 %v1116
        %v1150 = vpop.f32.mrf.mxu0
        %v1151 = vadd.f32 0.0, %v1150
        %v1152 = vpop.f32.mrf.mxu0
        %v1153 = vadd.f32 0.0, %v1152
        %1154 = vmatmul.bf16.gmra.mxu0 %v1119
        %v1155 = vpop.f32.mrf.mxu0
        %v1156 = vadd.f32 0.0, %v1155
        %v1157 = vpop.f32.mrf.mxu0
        %v1158 = vadd.f32 0.0, %v1157
        %1159 = vmatmul.bf16.gmra.mxu0 %v1122
        %v1160 = vpop.f32.mrf.mxu0
        %v1161 = vadd.f32 0.0, %v1160
        %v1162 = vpop.f32.mrf.mxu0
        %v1163 = vadd.f32 0.0, %v1162
        %1164 = vmatmul.bf16.gmra.mxu0 %v1125
        %v1165 = vpop.f32.mrf.mxu0
        %v1166 = vadd.f32 0.0, %v1165
        %v1167 = vpop.f32.mrf.mxu0
        %v1168 = vadd.f32 0.0, %v1167
        %1169 = vmatmul.bf16.gmra.mxu0 %v1128
        %v1170 = vpop.f32.mrf.mxu0
        %v1171 = vadd.f32 0.0, %v1170
        %v1172 = vpop.f32.mrf.mxu0
        %v1173 = vadd.f32 0.0, %v1172
        %1174 = vmatmul.bf16.gmra.mxu0 %v1131
        %v1175 = vpop.f32.mrf.mxu0
        %v1176 = vadd.f32 0.0, %v1175
        %v1177 = vpop.f32.mrf.mxu0
        %v1178 = vadd.f32 0.0, %v1177
        %1179 = vmatmul.bf16.gmra.mxu0 %v1134
        %v1180 = vpop.f32.mrf.mxu0
        %v1181 = vadd.f32 0.0, %v1180
        %v1182 = vpop.f32.mrf.mxu0
        %v1183 = vadd.f32 0.0, %v1182
        %1184 = vdwg.mxu0
        %v1189 = vunpack.c.l.b16 %v1059
        %v1190 = vunpack.c.l.b16 %v1060
        %v1191 = vunpack.c.l.b16 %v1061
        %v1192 = vunpack.c.l.b16 %v1062
        %v1193 = vpack.c.b16 %v1190, %v1189
        %v1194 = vpack.c.b16 %v1192, %v1191
        %1197 = vxpose.xlu0.c.b16.start [1/8] %v1193, 128
        %1198 = vxpose.xlu0.c.b16.cont [2/8] %v1194, 128
        %1199 = vxpose.xlu0.c.b16.cont [3/8] 0, 128
        %1200 = vxpose.xlu0.c.b16.cont [4/8] 0, 128
        %1201 = vxpose.xlu0.c.b16.cont [5/8] 0, 128
        %1202 = vxpose.xlu0.c.b16.cont [6/8] 0, 128
        %1203 = vxpose.xlu0.c.b16.cont [7/8] 0, 128
        %1204 = vxpose.xlu0.c.b16.end [8/8] 0, 128
        %v1205 = vpop.trf.xlu0
        %v1206 = vpop.trf.xlu0
        %v1207 = vpop.trf.xlu0
        %v1208 = vpop.trf.xlu0
        %v1209 = vpop.trf.xlu0
        %v1210 = vpop.trf.xlu0
        %v1211 = vpop.trf.xlu0
        %v1212 = vpop.trf.xlu0
        %v1217 = vunpack.c.l.b16 %v1043
        %v1218 = vunpack.c.l.b16 %v1044
        %v1219 = vunpack.c.l.b16 %v1045
        %v1220 = vunpack.c.l.b16 %v1046
        %v1221 = vpack.c.b16 %v1218, %v1217
        %v1222 = vpack.c.b16 %v1220, %v1219
        %v1226 = vsel %vm1111, %v1205, 0
        %v1229 = vsel %vm1111, %v1206, 0
        %v1232 = vsel %vm1111, %v1207, 0
        %v1235 = vsel %vm1111, %v1208, 0
        %v1238 = vsel %vm1111, %v1209, 0
        %v1241 = vsel %vm1111, %v1210, 0
        %v1244 = vsel %vm1111, %v1211, 0
        %v1247 = vsel %vm1111, %v1212, 0
        %1249 = vmatpush.bf16.msra.mxu0 0
        %1250 = vmatpush.bf16.msra.mxu0 0
        %1251 = vmatpush.bf16.msra.mxu0 0
        %1252 = vmatpush.bf16.msra.mxu0 0
        %1253 = vmatpush.bf16.msra.mxu0 0
        %1254 = vmatpush.bf16.msra.mxu0 0
        %1255 = vmatpush.bf16.msra.mxu0 %v1222
        %1256 = vmatpush.bf16.msra.mxu0 %v1221
        %1257 = vmatmul.bf16.gmra.mxu0 %v1226
        %v1258 = vpop.f32.mrf.mxu0
        %v1259 = vadd.f32 0.0, %v1258
        %v1260 = vpop.f32.mrf.mxu0
        %v1261 = vadd.f32 0.0, %v1260
        %1262 = vmatmul.bf16.gmra.mxu0 %v1229
        %v1263 = vpop.f32.mrf.mxu0
        %v1264 = vadd.f32 0.0, %v1263
        %v1265 = vpop.f32.mrf.mxu0
        %v1266 = vadd.f32 0.0, %v1265
        %1267 = vmatmul.bf16.gmra.mxu0 %v1232
        %v1268 = vpop.f32.mrf.mxu0
        %v1269 = vadd.f32 0.0, %v1268
        %v1270 = vpop.f32.mrf.mxu0
        %v1271 = vadd.f32 0.0, %v1270
        %1272 = vmatmul.bf16.gmra.mxu0 %v1235
        %v1273 = vpop.f32.mrf.mxu0
        %v1274 = vadd.f32 0.0, %v1273
        %v1275 = vpop.f32.mrf.mxu0
        %v1276 = vadd.f32 0.0, %v1275
        %1277 = vmatmul.bf16.gmra.mxu0 %v1238
        %v1278 = vpop.f32.mrf.mxu0
        %v1279 = vadd.f32 0.0, %v1278
        %v1280 = vpop.f32.mrf.mxu0
        %v1281 = vadd.f32 0.0, %v1280
        %1282 = vmatmul.bf16.gmra.mxu0 %v1241
        %v1283 = vpop.f32.mrf.mxu0
        %v1284 = vadd.f32 0.0, %v1283
        %v1285 = vpop.f32.mrf.mxu0
        %v1286 = vadd.f32 0.0, %v1285
        %1287 = vmatmul.bf16.gmra.mxu0 %v1244
        %v1288 = vpop.f32.mrf.mxu0
        %v1289 = vadd.f32 0.0, %v1288
        %v1290 = vpop.f32.mrf.mxu0
        %v1291 = vadd.f32 0.0, %v1290
        %1292 = vmatmul.bf16.gmra.mxu0 %v1247
        %v1293 = vpop.f32.mrf.mxu0
        %v1294 = vadd.f32 0.0, %v1293
        %v1295 = vpop.f32.mrf.mxu0
        %v1296 = vadd.f32 0.0, %v1295
        %1297 = vdwg.mxu0
        %v1302 = vunpack.c.l.b16 %v1063
        %v1303 = vunpack.c.l.b16 %v1064
        %v1304 = vunpack.c.l.b16 %v1065
        %v1305 = vunpack.c.l.b16 %v1066
        %v1306 = vpack.c.b16 %v1303, %v1302
        %v1307 = vpack.c.b16 %v1305, %v1304
        %1310 = vxpose.xlu0.c.b16.start [1/8] %v1306, 128
        %1311 = vxpose.xlu0.c.b16.cont [2/8] %v1307, 128
        %1312 = vxpose.xlu0.c.b16.cont [3/8] 0, 128
        %1313 = vxpose.xlu0.c.b16.cont [4/8] 0, 128
        %1314 = vxpose.xlu0.c.b16.cont [5/8] 0, 128
        %1315 = vxpose.xlu0.c.b16.cont [6/8] 0, 128
        %1316 = vxpose.xlu0.c.b16.cont [7/8] 0, 128
        %1317 = vxpose.xlu0.c.b16.end [8/8] 0, 128
        %v1318 = vpop.trf.xlu0
        %v1319 = vpop.trf.xlu0
        %v1320 = vpop.trf.xlu0
        %v1321 = vpop.trf.xlu0
        %v1322 = vpop.trf.xlu0
        %v1323 = vpop.trf.xlu0
        %v1324 = vpop.trf.xlu0
        %v1325 = vpop.trf.xlu0
        %v1330 = vunpack.c.l.b16 %v1047
        %v1331 = vunpack.c.l.b16 %v1048
        %v1332 = vunpack.c.l.b16 %v1049
        %v1333 = vunpack.c.l.b16 %v1050
        %v1334 = vpack.c.b16 %v1331, %v1330
        %v1335 = vpack.c.b16 %v1333, %v1332
        %v1339 = vsel %vm1111, %v1318, 0
        %v1342 = vsel %vm1111, %v1319, 0
        %v1345 = vsel %vm1111, %v1320, 0
        %v1348 = vsel %vm1111, %v1321, 0
        %v1351 = vsel %vm1111, %v1322, 0
        %v1354 = vsel %vm1111, %v1323, 0
        %v1357 = vsel %vm1111, %v1324, 0
        %v1360 = vsel %vm1111, %v1325, 0
        %1362 = vmatpush.bf16.msra.mxu0 0
        %1363 = vmatpush.bf16.msra.mxu0 0
        %1364 = vmatpush.bf16.msra.mxu0 0
        %1365 = vmatpush.bf16.msra.mxu0 0
        %1366 = vmatpush.bf16.msra.mxu0 0
        %1367 = vmatpush.bf16.msra.mxu0 0
        %1368 = vmatpush.bf16.msra.mxu0 %v1335
        %1369 = vmatpush.bf16.msra.mxu0 %v1334
        %1370 = vmatmul.bf16.gmra.mxu0 %v1339
        %v1371 = vpop.f32.mrf.mxu0
        %v1372 = vadd.f32 0.0, %v1371
        %v1373 = vpop.f32.mrf.mxu0
        %v1374 = vadd.f32 0.0, %v1373
        %1375 = vmatmul.bf16.gmra.mxu0 %v1342
        %v1376 = vpop.f32.mrf.mxu0
        %v1377 = vadd.f32 0.0, %v1376
        %v1378 = vpop.f32.mrf.mxu0
        %v1379 = vadd.f32 0.0, %v1378
        %1380 = vmatmul.bf16.gmra.mxu0 %v1345
        %v1381 = vpop.f32.mrf.mxu0
        %v1382 = vadd.f32 0.0, %v1381
        %v1383 = vpop.f32.mrf.mxu0
        %v1384 = vadd.f32 0.0, %v1383
        %1385 = vmatmul.bf16.gmra.mxu0 %v1348
        %v1386 = vpop.f32.mrf.mxu0
        %v1387 = vadd.f32 0.0, %v1386
        %v1388 = vpop.f32.mrf.mxu0
        %v1389 = vadd.f32 0.0, %v1388
        %1390 = vmatmul.bf16.gmra.mxu0 %v1351
        %v1391 = vpop.f32.mrf.mxu0
        %v1392 = vadd.f32 0.0, %v1391
        %v1393 = vpop.f32.mrf.mxu0
        %v1394 = vadd.f32 0.0, %v1393
        %1395 = vmatmul.bf16.gmra.mxu0 %v1354
        %v1396 = vpop.f32.mrf.mxu0
        %v1397 = vadd.f32 0.0, %v1396
        %v1398 = vpop.f32.mrf.mxu0
        %v1399 = vadd.f32 0.0, %v1398
        %1400 = vmatmul.bf16.gmra.mxu0 %v1357
        %v1401 = vpop.f32.mrf.mxu0
        %v1402 = vadd.f32 0.0, %v1401
        %v1403 = vpop.f32.mrf.mxu0
        %v1404 = vadd.f32 0.0, %v1403
        %1405 = vmatmul.bf16.gmra.mxu0 %v1360
        %v1406 = vpop.f32.mrf.mxu0
        %v1407 = vadd.f32 0.0, %v1406
        %v1408 = vpop.f32.mrf.mxu0
        %v1409 = vadd.f32 0.0, %v1408
        %1410 = vdwg.mxu0
        %v1415 = vunpack.c.l.b16 %v1067
        %v1416 = vunpack.c.l.b16 %v1068
        %v1417 = vunpack.c.l.b16 %v1069
        %v1418 = vunpack.c.l.b16 %v1070
        %v1419 = vpack.c.b16 %v1416, %v1415
        %v1420 = vpack.c.b16 %v1418, %v1417
        %1423 = vxpose.xlu0.c.b16.start [1/8] %v1419, 128
        %1424 = vxpose.xlu0.c.b16.cont [2/8] %v1420, 128
        %1425 = vxpose.xlu0.c.b16.cont [3/8] 0, 128
        %1426 = vxpose.xlu0.c.b16.cont [4/8] 0, 128
        %1427 = vxpose.xlu0.c.b16.cont [5/8] 0, 128
        %1428 = vxpose.xlu0.c.b16.cont [6/8] 0, 128
        %1429 = vxpose.xlu0.c.b16.cont [7/8] 0, 128
        %1430 = vxpose.xlu0.c.b16.end [8/8] 0, 128
        %v1431 = vpop.trf.xlu0
        %v1432 = vpop.trf.xlu0
        %v1433 = vpop.trf.xlu0
        %v1434 = vpop.trf.xlu0
        %v1435 = vpop.trf.xlu0
        %v1436 = vpop.trf.xlu0
        %v1437 = vpop.trf.xlu0
        %v1438 = vpop.trf.xlu0
        %v1443 = vunpack.c.l.b16 %v1051
        %v1444 = vunpack.c.l.b16 %v1052
        %v1445 = vunpack.c.l.b16 %v1053
        %v1446 = vunpack.c.l.b16 %v1054
        %v1447 = vpack.c.b16 %v1444, %v1443
        %v1448 = vpack.c.b16 %v1446, %v1445
        %v1452 = vsel %vm1111, %v1431, 0
        %v1455 = vsel %vm1111, %v1432, 0
        %v1458 = vsel %vm1111, %v1433, 0
        %v1461 = vsel %vm1111, %v1434, 0
        %v1464 = vsel %vm1111, %v1435, 0
        %v1467 = vsel %vm1111, %v1436, 0
        %v1470 = vsel %vm1111, %v1437, 0
        %v1473 = vsel %vm1111, %v1438, 0
        %1475 = vmatpush.bf16.msra.mxu0 0
        %1476 = vmatpush.bf16.msra.mxu0 0
        %1477 = vmatpush.bf16.msra.mxu0 0
        %1478 = vmatpush.bf16.msra.mxu0 0
        %1479 = vmatpush.bf16.msra.mxu0 0
        %1480 = vmatpush.bf16.msra.mxu0 0
        %1481 = vmatpush.bf16.msra.mxu0 %v1448
        %1482 = vmatpush.bf16.msra.mxu0 %v1447
        %1483 = vmatmul.bf16.gmra.mxu0 %v1452
        %v1484 = vpop.f32.mrf.mxu0
        %v1485 = vadd.f32 0.0, %v1484
        %v1486 = vpop.f32.mrf.mxu0
        %v1487 = vadd.f32 0.0, %v1486
        %1488 = vmatmul.bf16.gmra.mxu0 %v1455
        %v1489 = vpop.f32.mrf.mxu0
        %v1490 = vadd.f32 0.0, %v1489
        %v1491 = vpop.f32.mrf.mxu0
        %v1492 = vadd.f32 0.0, %v1491
        %1493 = vmatmul.bf16.gmra.mxu0 %v1458
        %v1494 = vpop.f32.mrf.mxu0
        %v1495 = vadd.f32 0.0, %v1494
        %v1496 = vpop.f32.mrf.mxu0
        %v1497 = vadd.f32 0.0, %v1496
        %1498 = vmatmul.bf16.gmra.mxu0 %v1461
        %v1499 = vpop.f32.mrf.mxu0
        %v1500 = vadd.f32 0.0, %v1499
        %v1501 = vpop.f32.mrf.mxu0
        %v1502 = vadd.f32 0.0, %v1501
        %1503 = vmatmul.bf16.gmra.mxu0 %v1464
        %v1504 = vpop.f32.mrf.mxu0
        %v1505 = vadd.f32 0.0, %v1504
        %v1506 = vpop.f32.mrf.mxu0
        %v1507 = vadd.f32 0.0, %v1506
        %1508 = vmatmul.bf16.gmra.mxu0 %v1467
        %v1509 = vpop.f32.mrf.mxu0
        %v1510 = vadd.f32 0.0, %v1509
        %v1511 = vpop.f32.mrf.mxu0
        %v1512 = vadd.f32 0.0, %v1511
        %1513 = vmatmul.bf16.gmra.mxu0 %v1470
        %v1514 = vpop.f32.mrf.mxu0
        %v1515 = vadd.f32 0.0, %v1514
        %v1516 = vpop.f32.mrf.mxu0
        %v1517 = vadd.f32 0.0, %v1516
        %1518 = vmatmul.bf16.gmra.mxu0 %v1473
        %v1519 = vpop.f32.mrf.mxu0
        %v1520 = vadd.f32 0.0, %v1519
        %v1521 = vpop.f32.mrf.mxu0
        %v1522 = vadd.f32 0.0, %v1521
        %1523 = vdwg.mxu0
        %v1524 = vmax.f32 %v1146, %v1148
        %v1525 = vmax.f32 %v1524, %v1151
        %v1526 = vmax.f32 %v1525, %v1153
        %v1527 = vmax.f32 %v1526, %v1156
        %v1528 = vmax.f32 %v1527, %v1158
        %v1529 = vmax.f32 %v1528, %v1161
        %v1530 = vmax.f32 %v1529, %v1163
        %v1531 = vmax.f32 %v1530, %v1166
        %v1532 = vmax.f32 %v1531, %v1168
        %v1533 = vmax.f32 %v1532, %v1171
        %v1534 = vmax.f32 %v1533, %v1173
        %v1535 = vmax.f32 %v1534, %v1176
        %v1536 = vmax.f32 %v1535, %v1178
        %v1537 = vmax.f32 %v1536, %v1181
        %v1538 = vmax.f32 %v1537, %v1183
        %v1539 = vrot.slane %v1538, 4
        %v1540 = vmax.f32 %v1538, %v1539
        %v1541 = vrot.slane %v1540, 2
        %v1542 = vmax.f32 %v1540, %v1541
        %v1543 = vrot.slane %v1542, 1
        %v1544 = vmax.f32 %v1542, %v1543
        %v1545 = vmax.f32 %v1259, %v1261
        %v1546 = vmax.f32 %v1545, %v1264
        %v1547 = vmax.f32 %v1546, %v1266
        %v1548 = vmax.f32 %v1547, %v1269
        %v1549 = vmax.f32 %v1548, %v1271
        %v1550 = vmax.f32 %v1549, %v1274
        %v1551 = vmax.f32 %v1550, %v1276
        %v1552 = vmax.f32 %v1551, %v1279
        %v1553 = vmax.f32 %v1552, %v1281
        %v1554 = vmax.f32 %v1553, %v1284
        %v1555 = vmax.f32 %v1554, %v1286
        %v1556 = vmax.f32 %v1555, %v1289
        %v1557 = vmax.f32 %v1556, %v1291
        %v1558 = vmax.f32 %v1557, %v1294
        %v1559 = vmax.f32 %v1558, %v1296
        %v1560 = vrot.slane %v1559, 4
        %v1561 = vmax.f32 %v1559, %v1560
        %v1562 = vrot.slane %v1561, 2
        %v1563 = vmax.f32 %v1561, %v1562
        %v1564 = vrot.slane %v1563, 1
        %v1565 = vmax.f32 %v1563, %v1564
        %v1566 = vmax.f32 %v1372, %v1374
        %v1567 = vmax.f32 %v1566, %v1377
        %v1568 = vmax.f32 %v1567, %v1379
        %v1569 = vmax.f32 %v1568, %v1382
        %v1570 = vmax.f32 %v1569, %v1384
        %v1571 = vmax.f32 %v1570, %v1387
        %v1572 = vmax.f32 %v1571, %v1389
        %v1573 = vmax.f32 %v1572, %v1392
        %v1574 = vmax.f32 %v1573, %v1394
        %v1575 = vmax.f32 %v1574, %v1397
        %v1576 = vmax.f32 %v1575, %v1399
        %v1577 = vmax.f32 %v1576, %v1402
        %v1578 = vmax.f32 %v1577, %v1404
        %v1579 = vmax.f32 %v1578, %v1407
        %v1580 = vmax.f32 %v1579, %v1409
        %v1581 = vrot.slane %v1580, 4
        %v1582 = vmax.f32 %v1580, %v1581
        %v1583 = vrot.slane %v1582, 2
        %v1584 = vmax.f32 %v1582, %v1583
        %v1585 = vrot.slane %v1584, 1
        %v1586 = vmax.f32 %v1584, %v1585
        %v1587 = vmax.f32 %v1485, %v1487
        %v1588 = vmax.f32 %v1587, %v1490
        %v1589 = vmax.f32 %v1588, %v1492
        %v1590 = vmax.f32 %v1589, %v1495
        %v1591 = vmax.f32 %v1590, %v1497
        %v1592 = vmax.f32 %v1591, %v1500
        %v1593 = vmax.f32 %v1592, %v1502
        %v1594 = vmax.f32 %v1593, %v1505
        %v1595 = vmax.f32 %v1594, %v1507
        %v1596 = vmax.f32 %v1595, %v1510
        %v1597 = vmax.f32 %v1596, %v1512
        %v1598 = vmax.f32 %v1597, %v1515
        %v1599 = vmax.f32 %v1598, %v1517
        %v1600 = vmax.f32 %v1599, %v1520
        %v1601 = vmax.f32 %v1600, %v1522
        %v1602 = vrot.slane %v1601, 4
        %v1603 = vmax.f32 %v1601, %v1602
        %v1604 = vrot.slane %v1603, 2
        %v1605 = vmax.f32 %v1603, %v1604
        %v1606 = vrot.slane %v1605, 1
        %v1607 = vmax.f32 %v1605, %v1606
        %v1608 = vsub.f32 %v1146, %v1544
        %v1609 = vsub.f32 %v1148, %v1544
        %v1610 = vsub.f32 %v1151, %v1544
        %v1611 = vsub.f32 %v1153, %v1544
        %v1612 = vsub.f32 %v1156, %v1544
        %v1613 = vsub.f32 %v1158, %v1544
        %v1614 = vsub.f32 %v1161, %v1544
        %v1615 = vsub.f32 %v1163, %v1544
        %v1616 = vsub.f32 %v1166, %v1544
        %v1617 = vsub.f32 %v1168, %v1544
        %v1618 = vsub.f32 %v1171, %v1544
        %v1619 = vsub.f32 %v1173, %v1544
        %v1620 = vsub.f32 %v1176, %v1544
        %v1621 = vsub.f32 %v1178, %v1544
        %v1622 = vsub.f32 %v1181, %v1544
        %v1623 = vsub.f32 %v1183, %v1544
        %v1624 = vsub.f32 %v1259, %v1565
        %v1625 = vsub.f32 %v1261, %v1565
        %v1626 = vsub.f32 %v1264, %v1565
        %v1627 = vsub.f32 %v1266, %v1565
        %v1628 = vsub.f32 %v1269, %v1565
        %v1629 = vsub.f32 %v1271, %v1565
        %v1630 = vsub.f32 %v1274, %v1565
        %v1631 = vsub.f32 %v1276, %v1565
        %v1632 = vsub.f32 %v1279, %v1565
        %v1633 = vsub.f32 %v1281, %v1565
        %v1634 = vsub.f32 %v1284, %v1565
        %v1635 = vsub.f32 %v1286, %v1565
        %v1636 = vsub.f32 %v1289, %v1565
        %v1637 = vsub.f32 %v1291, %v1565
        %v1638 = vsub.f32 %v1294, %v1565
        %v1639 = vsub.f32 %v1296, %v1565
        %v1640 = vsub.f32 %v1372, %v1586
        %v1641 = vsub.f32 %v1374, %v1586
        %v1642 = vsub.f32 %v1377, %v1586
        %v1643 = vsub.f32 %v1379, %v1586
        %v1644 = vsub.f32 %v1382, %v1586
        %v1645 = vsub.f32 %v1384, %v1586
        %v1646 = vsub.f32 %v1387, %v1586
        %v1647 = vsub.f32 %v1389, %v1586
        %v1648 = vsub.f32 %v1392, %v1586
        %v1649 = vsub.f32 %v1394, %v1586
        %v1650 = vsub.f32 %v1397, %v1586
        %v1651 = vsub.f32 %v1399, %v1586
        %v1652 = vsub.f32 %v1402, %v1586
        %v1653 = vsub.f32 %v1404, %v1586
        %v1654 = vsub.f32 %v1407, %v1586
        %v1655 = vsub.f32 %v1409, %v1586
        %v1656 = vsub.f32 %v1485, %v1607
        %v1657 = vsub.f32 %v1487, %v1607
        %v1658 = vsub.f32 %v1490, %v1607
        %v1659 = vsub.f32 %v1492, %v1607
        %v1660 = vsub.f32 %v1495, %v1607
        %v1661 = vsub.f32 %v1497, %v1607
        %v1662 = vsub.f32 %v1500, %v1607
        %v1663 = vsub.f32 %v1502, %v1607
        %v1664 = vsub.f32 %v1505, %v1607
        %v1665 = vsub.f32 %v1507, %v1607
        %v1666 = vsub.f32 %v1510, %v1607
        %v1667 = vsub.f32 %v1512, %v1607
        %v1668 = vsub.f32 %v1515, %v1607
        %v1669 = vsub.f32 %v1517, %v1607
        %v1670 = vsub.f32 %v1520, %v1607
        %v1671 = vsub.f32 %v1522, %v1607
        %v1672 = vmul.f32 %v1608, 1.442695
        %v1673 = vpow.pop %v1672
        %v1674 = vmul.f32 %v1609, 1.442695
        %v1675 = vpow.pop %v1674
        %v1676 = vmul.f32 %v1610, 1.442695
        %v1677 = vpow.pop %v1676
        %v1678 = vmul.f32 %v1611, 1.442695
        %v1679 = vpow.pop %v1678
        %v1680 = vmul.f32 %v1612, 1.442695
        %v1681 = vpow.pop %v1680
        %v1682 = vmul.f32 %v1613, 1.442695
        %v1683 = vpow.pop %v1682
        %v1684 = vmul.f32 %v1614, 1.442695
        %v1685 = vpow.pop %v1684
        %v1686 = vmul.f32 %v1615, 1.442695
        %v1687 = vpow.pop %v1686
        %v1688 = vmul.f32 %v1616, 1.442695
        %v1689 = vpow.pop %v1688
        %v1690 = vmul.f32 %v1617, 1.442695
        %v1691 = vpow.pop %v1690
        %v1692 = vmul.f32 %v1618, 1.442695
        %v1693 = vpow.pop %v1692
        %v1694 = vmul.f32 %v1619, 1.442695
        %v1695 = vpow.pop %v1694
        %v1696 = vmul.f32 %v1620, 1.442695
        %v1697 = vpow.pop %v1696
        %v1698 = vmul.f32 %v1621, 1.442695
        %v1699 = vpow.pop %v1698
        %v1700 = vmul.f32 %v1622, 1.442695
        %v1701 = vpow.pop %v1700
        %v1702 = vmul.f32 %v1623, 1.442695
        %v1703 = vpow.pop %v1702
        %v1704 = vmul.f32 %v1624, 1.442695
        %v1705 = vpow.pop %v1704
        %v1706 = vmul.f32 %v1625, 1.442695
        %v1707 = vpow.pop %v1706
        %v1708 = vmul.f32 %v1626, 1.442695
        %v1709 = vpow.pop %v1708
        %v1710 = vmul.f32 %v1627, 1.442695
        %v1711 = vpow.pop %v1710
        %v1712 = vmul.f32 %v1628, 1.442695
        %v1713 = vpow.pop %v1712
        %v1714 = vmul.f32 %v1629, 1.442695
        %v1715 = vpow.pop %v1714
        %v1716 = vmul.f32 %v1630, 1.442695
        %v1717 = vpow.pop %v1716
        %v1718 = vmul.f32 %v1631, 1.442695
        %v1719 = vpow.pop %v1718
        %v1720 = vmul.f32 %v1632, 1.442695
        %v1721 = vpow.pop %v1720
        %v1722 = vmul.f32 %v1633, 1.442695
        %v1723 = vpow.pop %v1722
        %v1724 = vmul.f32 %v1634, 1.442695
        %v1725 = vpow.pop %v1724
        %v1726 = vmul.f32 %v1635, 1.442695
        %v1727 = vpow.pop %v1726
        %v1728 = vmul.f32 %v1636, 1.442695
        %v1729 = vpow.pop %v1728
        %v1730 = vmul.f32 %v1637, 1.442695
        %v1731 = vpow.pop %v1730
        %v1732 = vmul.f32 %v1638, 1.442695
        %v1733 = vpow.pop %v1732
        %v1734 = vmul.f32 %v1639, 1.442695
        %v1735 = vpow.pop %v1734
        %v1736 = vmul.f32 %v1640, 1.442695
        %v1737 = vpow.pop %v1736
        %v1738 = vmul.f32 %v1641, 1.442695
        %v1739 = vpow.pop %v1738
        %v1740 = vmul.f32 %v1642, 1.442695
        %v1741 = vpow.pop %v1740
        %v1742 = vmul.f32 %v1643, 1.442695
        %v1743 = vpow.pop %v1742
        %v1744 = vmul.f32 %v1644, 1.442695
        %v1745 = vpow.pop %v1744
        %v1746 = vmul.f32 %v1645, 1.442695
        %v1747 = vpow.pop %v1746
        %v1748 = vmul.f32 %v1646, 1.442695
        %v1749 = vpow.pop %v1748
        %v1750 = vmul.f32 %v1647, 1.442695
        %v1751 = vpow.pop %v1750
        %v1752 = vmul.f32 %v1648, 1.442695
        %v1753 = vpow.pop %v1752
        %v1754 = vmul.f32 %v1649, 1.442695
        %v1755 = vpow.pop %v1754
        %v1756 = vmul.f32 %v1650, 1.442695
        %v1757 = vpow.pop %v1756
        %v1758 = vmul.f32 %v1651, 1.442695
        %v1759 = vpow.pop %v1758
        %v1760 = vmul.f32 %v1652, 1.442695
        %v1761 = vpow.pop %v1760
        %v1762 = vmul.f32 %v1653, 1.442695
        %v1763 = vpow.pop %v1762
        %v1764 = vmul.f32 %v1654, 1.442695
        %v1765 = vpow.pop %v1764
        %v1766 = vmul.f32 %v1655, 1.442695
        %v1767 = vpow.pop %v1766
        %v1768 = vmul.f32 %v1656, 1.442695
        %v1769 = vpow.pop %v1768
        %v1770 = vmul.f32 %v1657, 1.442695
        %v1771 = vpow.pop %v1770
        %v1772 = vmul.f32 %v1658, 1.442695
        %v1773 = vpow.pop %v1772
        %v1774 = vmul.f32 %v1659, 1.442695
        %v1775 = vpow.pop %v1774
        %v1776 = vmul.f32 %v1660, 1.442695
        %v1777 = vpow.pop %v1776
        %v1778 = vmul.f32 %v1661, 1.442695
        %v1779 = vpow.pop %v1778
        %v1780 = vmul.f32 %v1662, 1.442695
        %v1781 = vpow.pop %v1780
        %v1782 = vmul.f32 %v1663, 1.442695
        %v1783 = vpow.pop %v1782
        %v1784 = vmul.f32 %v1664, 1.442695
        %v1785 = vpow.pop %v1784
        %v1786 = vmul.f32 %v1665, 1.442695
        %v1787 = vpow.pop %v1786
        %v1788 = vmul.f32 %v1666, 1.442695
        %v1789 = vpow.pop %v1788
        %v1790 = vmul.f32 %v1667, 1.442695
        %v1791 = vpow.pop %v1790
        %v1792 = vmul.f32 %v1668, 1.442695
        %v1793 = vpow.pop %v1792
        %v1794 = vmul.f32 %v1669, 1.442695
        %v1795 = vpow.pop %v1794
        %v1796 = vmul.f32 %v1670, 1.442695
        %v1797 = vpow.pop %v1796
        %v1798 = vmul.f32 %v1671, 1.442695
        %v1799 = vpow.pop %v1798
        %v1800 = vadd.f32 %v1673, %v1675
        %v1801 = vadd.f32 %v1800, %v1677
        %v1802 = vadd.f32 %v1801, %v1679
        %v1803 = vadd.f32 %v1802, %v1681
        %v1804 = vadd.f32 %v1803, %v1683
        %v1805 = vadd.f32 %v1804, %v1685
        %v1806 = vadd.f32 %v1805, %v1687
        %v1807 = vadd.f32 %v1806, %v1689
        %v1808 = vadd.f32 %v1807, %v1691
        %v1809 = vadd.f32 %v1808, %v1693
        %v1810 = vadd.f32 %v1809, %v1695
        %v1811 = vadd.f32 %v1810, %v1697
        %v1812 = vadd.f32 %v1811, %v1699
        %v1813 = vadd.f32 %v1812, %v1701
        %v1814 = vadd.f32 %v1813, %v1703
        %v1815 = vrot.slane %v1814, 4
        %v1816 = vadd.f32 %v1814, %v1815
        %v1817 = vrot.slane %v1816, 2
        %v1818 = vadd.f32 %v1816, %v1817
        %v1819 = vrot.slane %v1818, 1
        %v1820 = vadd.f32 %v1818, %v1819
        %v1821 = vadd.f32 %v1705, %v1707
        %v1822 = vadd.f32 %v1821, %v1709
        %v1823 = vadd.f32 %v1822, %v1711
        %v1824 = vadd.f32 %v1823, %v1713
        %v1825 = vadd.f32 %v1824, %v1715
        %v1826 = vadd.f32 %v1825, %v1717
        %v1827 = vadd.f32 %v1826, %v1719
        %v1828 = vadd.f32 %v1827, %v1721
        %v1829 = vadd.f32 %v1828, %v1723
        %v1830 = vadd.f32 %v1829, %v1725
        %v1831 = vadd.f32 %v1830, %v1727
        %v1832 = vadd.f32 %v1831, %v1729
        %v1833 = vadd.f32 %v1832, %v1731
        %v1834 = vadd.f32 %v1833, %v1733
        %v1835 = vadd.f32 %v1834, %v1735
        %v1836 = vrot.slane %v1835, 4
        %v1837 = vadd.f32 %v1835, %v1836
        %v1838 = vrot.slane %v1837, 2
        %v1839 = vadd.f32 %v1837, %v1838
        %v1840 = vrot.slane %v1839, 1
        %v1841 = vadd.f32 %v1839, %v1840
        %v1842 = vadd.f32 %v1737, %v1739
        %v1843 = vadd.f32 %v1842, %v1741
        %v1844 = vadd.f32 %v1843, %v1743
        %v1845 = vadd.f32 %v1844, %v1745
        %v1846 = vadd.f32 %v1845, %v1747
        %v1847 = vadd.f32 %v1846, %v1749
        %v1848 = vadd.f32 %v1847, %v1751
        %v1849 = vadd.f32 %v1848, %v1753
        %v1850 = vadd.f32 %v1849, %v1755
        %v1851 = vadd.f32 %v1850, %v1757
        %v1852 = vadd.f32 %v1851, %v1759
        %v1853 = vadd.f32 %v1852, %v1761
        %v1854 = vadd.f32 %v1853, %v1763
        %v1855 = vadd.f32 %v1854, %v1765
        %v1856 = vadd.f32 %v1855, %v1767
        %v1857 = vrot.slane %v1856, 4
        %v1858 = vadd.f32 %v1856, %v1857
        %v1859 = vrot.slane %v1858, 2
        %v1860 = vadd.f32 %v1858, %v1859
        %v1861 = vrot.slane %v1860, 1
        %v1862 = vadd.f32 %v1860, %v1861
        %v1863 = vadd.f32 %v1769, %v1771
        %v1864 = vadd.f32 %v1863, %v1773
        %v1865 = vadd.f32 %v1864, %v1775
        %v1866 = vadd.f32 %v1865, %v1777
        %v1867 = vadd.f32 %v1866, %v1779
        %v1868 = vadd.f32 %v1867, %v1781
        %v1869 = vadd.f32 %v1868, %v1783
        %v1870 = vadd.f32 %v1869, %v1785
        %v1871 = vadd.f32 %v1870, %v1787
        %v1872 = vadd.f32 %v1871, %v1789
        %v1873 = vadd.f32 %v1872, %v1791
        %v1874 = vadd.f32 %v1873, %v1793
        %v1875 = vadd.f32 %v1874, %v1795
        %v1876 = vadd.f32 %v1875, %v1797
        %v1877 = vadd.f32 %v1876, %v1799
        %v1878 = vrot.slane %v1877, 4
        %v1879 = vadd.f32 %v1877, %v1878
        %v1880 = vrot.slane %v1879, 2
        %v1881 = vadd.f32 %v1879, %v1880
        %v1882 = vrot.slane %v1881, 1
        %v1883 = vadd.f32 %v1881, %v1882
        %v1884 = vpack.c.bf16 %v1673, %v1673
        %v1885 = vpack.c.bf16 %v1675, %v1675
        %v1886 = vpack.c.bf16 %v1677, %v1677
        %v1887 = vpack.c.bf16 %v1679, %v1679
        %v1888 = vpack.c.bf16 %v1681, %v1681
        %v1889 = vpack.c.bf16 %v1683, %v1683
        %v1890 = vpack.c.bf16 %v1685, %v1685
        %v1891 = vpack.c.bf16 %v1687, %v1687
        %v1892 = vpack.c.bf16 %v1689, %v1689
        %v1893 = vpack.c.bf16 %v1691, %v1691
        %v1894 = vpack.c.bf16 %v1693, %v1693
        %v1895 = vpack.c.bf16 %v1695, %v1695
        %v1896 = vpack.c.bf16 %v1697, %v1697
        %v1897 = vpack.c.bf16 %v1699, %v1699
        %v1898 = vpack.c.bf16 %v1701, %v1701
        %v1899 = vpack.c.bf16 %v1703, %v1703
        %v1900 = vpack.c.bf16 %v1705, %v1705
        %v1901 = vpack.c.bf16 %v1707, %v1707
        %v1902 = vpack.c.bf16 %v1709, %v1709
        %v1903 = vpack.c.bf16 %v1711, %v1711
        %v1904 = vpack.c.bf16 %v1713, %v1713
        %v1905 = vpack.c.bf16 %v1715, %v1715
        %v1906 = vpack.c.bf16 %v1717, %v1717
        %v1907 = vpack.c.bf16 %v1719, %v1719
        %v1908 = vpack.c.bf16 %v1721, %v1721
        %v1909 = vpack.c.bf16 %v1723, %v1723
        %v1910 = vpack.c.bf16 %v1725, %v1725
        %v1911 = vpack.c.bf16 %v1727, %v1727
        %v1912 = vpack.c.bf16 %v1729, %v1729
        %v1913 = vpack.c.bf16 %v1731, %v1731
        %v1914 = vpack.c.bf16 %v1733, %v1733
        %v1915 = vpack.c.bf16 %v1735, %v1735
        %v1916 = vpack.c.bf16 %v1737, %v1737
        %v1917 = vpack.c.bf16 %v1739, %v1739
        %v1918 = vpack.c.bf16 %v1741, %v1741
        %v1919 = vpack.c.bf16 %v1743, %v1743
        %v1920 = vpack.c.bf16 %v1745, %v1745
        %v1921 = vpack.c.bf16 %v1747, %v1747
        %v1922 = vpack.c.bf16 %v1749, %v1749
        %v1923 = vpack.c.bf16 %v1751, %v1751
        %v1924 = vpack.c.bf16 %v1753, %v1753
        %v1925 = vpack.c.bf16 %v1755, %v1755
        %v1926 = vpack.c.bf16 %v1757, %v1757
        %v1927 = vpack.c.bf16 %v1759, %v1759
        %v1928 = vpack.c.bf16 %v1761, %v1761
        %v1929 = vpack.c.bf16 %v1763, %v1763
        %v1930 = vpack.c.bf16 %v1765, %v1765
        %v1931 = vpack.c.bf16 %v1767, %v1767
        %v1932 = vpack.c.bf16 %v1769, %v1769
        %v1933 = vpack.c.bf16 %v1771, %v1771
        %v1934 = vpack.c.bf16 %v1773, %v1773
        %v1935 = vpack.c.bf16 %v1775, %v1775
        %v1936 = vpack.c.bf16 %v1777, %v1777
        %v1937 = vpack.c.bf16 %v1779, %v1779
        %v1938 = vpack.c.bf16 %v1781, %v1781
        %v1939 = vpack.c.bf16 %v1783, %v1783
        %v1940 = vpack.c.bf16 %v1785, %v1785
        %v1941 = vpack.c.bf16 %v1787, %v1787
        %v1942 = vpack.c.bf16 %v1789, %v1789
        %v1943 = vpack.c.bf16 %v1791, %v1791
        %v1944 = vpack.c.bf16 %v1793, %v1793
        %v1945 = vpack.c.bf16 %v1795, %v1795
        %v1946 = vpack.c.bf16 %v1797, %v1797
        %v1947 = vpack.c.bf16 %v1799, %v1799
        %v1952 = vunpack.c.l.b16 %v351
        %v1953 = vunpack.c.l.b16 %v352
        %v1954 = vunpack.c.l.b16 %v353
        %v1955 = vunpack.c.l.b16 %v354
        %v1956 = vpack.c.b16 %v1953, %v1952
        %v1957 = vpack.c.b16 %v1955, %v1954
        %v1976 = vunpack.c.l.b16 %v1884
        %v1977 = vunpack.c.l.b16 %v1885
        %v1978 = vunpack.c.l.b16 %v1886
        %v1979 = vunpack.c.l.b16 %v1887
        %v1980 = vunpack.c.l.b16 %v1888
        %v1981 = vunpack.c.l.b16 %v1889
        %v1982 = vunpack.c.l.b16 %v1890
        %v1983 = vunpack.c.l.b16 %v1891
        %v1984 = vunpack.c.l.b16 %v1892
        %v1985 = vunpack.c.l.b16 %v1893
        %v1986 = vunpack.c.l.b16 %v1894
        %v1987 = vunpack.c.l.b16 %v1895
        %v1988 = vunpack.c.l.b16 %v1896
        %v1989 = vunpack.c.l.b16 %v1897
        %v1990 = vunpack.c.l.b16 %v1898
        %v1991 = vunpack.c.l.b16 %v1899
        %v1992 = vpack.c.b16 %v1977, %v1976
        %v1993 = vpack.c.b16 %v1979, %v1978
        %v1994 = vpack.c.b16 %v1981, %v1980
        %v1995 = vpack.c.b16 %v1983, %v1982
        %v1996 = vpack.c.b16 %v1985, %v1984
        %v1997 = vpack.c.b16 %v1987, %v1986
        %v1998 = vpack.c.b16 %v1989, %v1988
        %v1999 = vpack.c.b16 %v1991, %v1990
        %2008 = vmatpush.bf16.msra.mxu0 %v1999
        %2009 = vmatpush.bf16.msra.mxu0 %v1998
        %2010 = vmatpush.bf16.msra.mxu0 %v1997
        %2011 = vmatpush.bf16.msra.mxu0 %v1996
        %2012 = vmatpush.bf16.msra.mxu0 %v1995
        %2013 = vmatpush.bf16.msra.mxu0 %v1994
        %2014 = vmatpush.bf16.msra.mxu0 %v1993
        %2015 = vmatpush.bf16.msra.mxu0 %v1992
        %2016 = vmatmul.bf16.gmra.mxu0 %v1956
        %v2017 = vpop.f32.mrf.mxu0
        %v2018 = vadd.f32 0.0, %v2017
        %v2019 = vpop.f32.mrf.mxu0
        %v2020 = vadd.f32 0.0, %v2019
        %2021 = vmatmul.bf16.gmra.mxu0 %v1957
        %v2022 = vpop.f32.mrf.mxu0
        %v2023 = vadd.f32 0.0, %v2022
        %v2024 = vpop.f32.mrf.mxu0
        %v2025 = vadd.f32 0.0, %v2024
        %2026 = vdwg.mxu0
        %v2031 = vunpack.c.l.b16 %v355
        %v2032 = vunpack.c.l.b16 %v356
        %v2033 = vunpack.c.l.b16 %v357
        %v2034 = vunpack.c.l.b16 %v358
        %v2035 = vpack.c.b16 %v2032, %v2031
        %v2036 = vpack.c.b16 %v2034, %v2033
        %v2055 = vunpack.c.l.b16 %v1900
        %v2056 = vunpack.c.l.b16 %v1901
        %v2057 = vunpack.c.l.b16 %v1902
        %v2058 = vunpack.c.l.b16 %v1903
        %v2059 = vunpack.c.l.b16 %v1904
        %v2060 = vunpack.c.l.b16 %v1905
        %v2061 = vunpack.c.l.b16 %v1906
        %v2062 = vunpack.c.l.b16 %v1907
        %v2063 = vunpack.c.l.b16 %v1908
        %v2064 = vunpack.c.l.b16 %v1909
        %v2065 = vunpack.c.l.b16 %v1910
        %v2066 = vunpack.c.l.b16 %v1911
        %v2067 = vunpack.c.l.b16 %v1912
        %v2068 = vunpack.c.l.b16 %v1913
        %v2069 = vunpack.c.l.b16 %v1914
        %v2070 = vunpack.c.l.b16 %v1915
        %v2071 = vpack.c.b16 %v2056, %v2055
        %v2072 = vpack.c.b16 %v2058, %v2057
        %v2073 = vpack.c.b16 %v2060, %v2059
        %v2074 = vpack.c.b16 %v2062, %v2061
        %v2075 = vpack.c.b16 %v2064, %v2063
        %v2076 = vpack.c.b16 %v2066, %v2065
        %v2077 = vpack.c.b16 %v2068, %v2067
        %v2078 = vpack.c.b16 %v2070, %v2069
        %2087 = vmatpush.bf16.msra.mxu0 %v2078
        %2088 = vmatpush.bf16.msra.mxu0 %v2077
        %2089 = vmatpush.bf16.msra.mxu0 %v2076
        %2090 = vmatpush.bf16.msra.mxu0 %v2075
        %2091 = vmatpush.bf16.msra.mxu0 %v2074
        %2092 = vmatpush.bf16.msra.mxu0 %v2073
        %2093 = vmatpush.bf16.msra.mxu0 %v2072
        %2094 = vmatpush.bf16.msra.mxu0 %v2071
        %2095 = vmatmul.bf16.gmra.mxu0 %v2035
        %v2096 = vpop.f32.mrf.mxu0
        %v2097 = vadd.f32 0.0, %v2096
        %v2098 = vpop.f32.mrf.mxu0
        %v2099 = vadd.f32 0.0, %v2098
        %2100 = vmatmul.bf16.gmra.mxu0 %v2036
        %v2101 = vpop.f32.mrf.mxu0
        %v2102 = vadd.f32 0.0, %v2101
        %v2103 = vpop.f32.mrf.mxu0
        %v2104 = vadd.f32 0.0, %v2103
        %2105 = vdwg.mxu0
        %v2110 = vunpack.c.l.b16 %v359
        %v2111 = vunpack.c.l.b16 %v360
        %v2112 = vunpack.c.l.b16 %v361
        %v2113 = vunpack.c.l.b16 %v362
        %v2114 = vpack.c.b16 %v2111, %v2110
        %v2115 = vpack.c.b16 %v2113, %v2112
        %v2134 = vunpack.c.l.b16 %v1916
        %v2135 = vunpack.c.l.b16 %v1917
        %v2136 = vunpack.c.l.b16 %v1918
        %v2137 = vunpack.c.l.b16 %v1919
        %v2138 = vunpack.c.l.b16 %v1920
        %v2139 = vunpack.c.l.b16 %v1921
        %v2140 = vunpack.c.l.b16 %v1922
        %v2141 = vunpack.c.l.b16 %v1923
        %v2142 = vunpack.c.l.b16 %v1924
        %v2143 = vunpack.c.l.b16 %v1925
        %v2144 = vunpack.c.l.b16 %v1926
        %v2145 = vunpack.c.l.b16 %v1927
        %v2146 = vunpack.c.l.b16 %v1928
        %v2147 = vunpack.c.l.b16 %v1929
        %v2148 = vunpack.c.l.b16 %v1930
        %v2149 = vunpack.c.l.b16 %v1931
        %v2150 = vpack.c.b16 %v2135, %v2134
        %v2151 = vpack.c.b16 %v2137, %v2136
        %v2152 = vpack.c.b16 %v2139, %v2138
        %v2153 = vpack.c.b16 %v2141, %v2140
        %v2154 = vpack.c.b16 %v2143, %v2142
        %v2155 = vpack.c.b16 %v2145, %v2144
        %v2156 = vpack.c.b16 %v2147, %v2146
        %v2157 = vpack.c.b16 %v2149, %v2148
        %2166 = vmatpush.bf16.msra.mxu0 %v2157
        %2167 = vmatpush.bf16.msra.mxu0 %v2156
        %2168 = vmatpush.bf16.msra.mxu0 %v2155
        %2169 = vmatpush.bf16.msra.mxu0 %v2154
        %2170 = vmatpush.bf16.msra.mxu0 %v2153
        %2171 = vmatpush.bf16.msra.mxu0 %v2152
        %2172 = vmatpush.bf16.msra.mxu0 %v2151
        %2173 = vmatpush.bf16.msra.mxu0 %v2150
        %2174 = vmatmul.bf16.gmra.mxu0 %v2114
        %v2175 = vpop.f32.mrf.mxu0
        %v2176 = vadd.f32 0.0, %v2175
        %v2177 = vpop.f32.mrf.mxu0
        %v2178 = vadd.f32 0.0, %v2177
        %2179 = vmatmul.bf16.gmra.mxu0 %v2115
        %v2180 = vpop.f32.mrf.mxu0
        %v2181 = vadd.f32 0.0, %v2180
        %v2182 = vpop.f32.mrf.mxu0
        %v2183 = vadd.f32 0.0, %v2182
        %2184 = vdwg.mxu0
        %v2189 = vunpack.c.l.b16 %v363
        %v2190 = vunpack.c.l.b16 %v364
        %v2191 = vunpack.c.l.b16 %v365
        %v2192 = vunpack.c.l.b16 %v366
        %v2193 = vpack.c.b16 %v2190, %v2189
        %v2194 = vpack.c.b16 %v2192, %v2191
        %v2213 = vunpack.c.l.b16 %v1932
        %v2214 = vunpack.c.l.b16 %v1933
        %v2215 = vunpack.c.l.b16 %v1934
        %v2216 = vunpack.c.l.b16 %v1935
        %v2217 = vunpack.c.l.b16 %v1936
        %v2218 = vunpack.c.l.b16 %v1937
        %v2219 = vunpack.c.l.b16 %v1938
        %v2220 = vunpack.c.l.b16 %v1939
        %v2221 = vunpack.c.l.b16 %v1940
        %v2222 = vunpack.c.l.b16 %v1941
        %v2223 = vunpack.c.l.b16 %v1942
        %v2224 = vunpack.c.l.b16 %v1943
        %v2225 = vunpack.c.l.b16 %v1944
        %v2226 = vunpack.c.l.b16 %v1945
        %v2227 = vunpack.c.l.b16 %v1946
        %v2228 = vunpack.c.l.b16 %v1947
        %v2229 = vpack.c.b16 %v2214, %v2213
        %v2230 = vpack.c.b16 %v2216, %v2215
        %v2231 = vpack.c.b16 %v2218, %v2217
        %v2232 = vpack.c.b16 %v2220, %v2219
        %v2233 = vpack.c.b16 %v2222, %v2221
        %v2234 = vpack.c.b16 %v2224, %v2223
        %v2235 = vpack.c.b16 %v2226, %v2225
        %v2236 = vpack.c.b16 %v2228, %v2227
        %2245 = vmatpush.bf16.msra.mxu0 %v2236
        %2246 = vmatpush.bf16.msra.mxu0 %v2235
        %2247 = vmatpush.bf16.msra.mxu0 %v2234
        %2248 = vmatpush.bf16.msra.mxu0 %v2233
        %2249 = vmatpush.bf16.msra.mxu0 %v2232
        %2250 = vmatpush.bf16.msra.mxu0 %v2231
        %2251 = vmatpush.bf16.msra.mxu0 %v2230
        %2252 = vmatpush.bf16.msra.mxu0 %v2229
        %2253 = vmatmul.bf16.gmra.mxu0 %v2193
        %v2254 = vpop.f32.mrf.mxu0
        %v2255 = vadd.f32 0.0, %v2254
        %v2256 = vpop.f32.mrf.mxu0
        %v2257 = vadd.f32 0.0, %v2256
        %2258 = vmatmul.bf16.gmra.mxu0 %v2194
        %v2259 = vpop.f32.mrf.mxu0
        %v2260 = vadd.f32 0.0, %v2259
        %v2261 = vpop.f32.mrf.mxu0
        %v2262 = vadd.f32 0.0, %v2261
        %2263 = vdwg.mxu0
        %v2264 = vrcp.pop %v1820
        %v2265 = vrcp.pop %v1841
        %v2266 = vrcp.pop %v1862
        %v2267 = vrcp.pop %v1883
        %v2268 = vmul.f32 %v2018, %v2264
        %v2269 = vmul.f32 %v2020, %v2264
        %v2270 = vmul.f32 %v2023, %v2264
        %v2271 = vmul.f32 %v2025, %v2264
        %v2272 = vmul.f32 %v2097, %v2265
        %v2273 = vmul.f32 %v2099, %v2265
        %v2274 = vmul.f32 %v2102, %v2265
        %v2275 = vmul.f32 %v2104, %v2265
        %v2276 = vmul.f32 %v2176, %v2266
        %v2277 = vmul.f32 %v2178, %v2266
        %v2278 = vmul.f32 %v2181, %v2266
        %v2279 = vmul.f32 %v2183, %v2266
        %v2280 = vmul.f32 %v2255, %v2267
        %v2281 = vmul.f32 %v2257, %v2267
        %v2282 = vmul.f32 %v2260, %v2267
        %v2283 = vmul.f32 %v2262, %v2267
        %v2284 = vadd.f32 %v2268, %v975
        %v2285 = vadd.f32 %v2269, %v976
        %v2286 = vadd.f32 %v2270, %v977
        %v2287 = vadd.f32 %v2271, %v978
        %v2288 = vadd.f32 %v2272, %v979
        %v2289 = vadd.f32 %v2273, %v980
        %v2290 = vadd.f32 %v2274, %v981
        %v2291 = vadd.f32 %v2275, %v982
        %v2292 = vadd.f32 %v2276, %v983
        %v2293 = vadd.f32 %v2277, %v984
        %v2294 = vadd.f32 %v2278, %v985
        %v2295 = vadd.f32 %v2279, %v986
        %v2296 = vadd.f32 %v2280, %v987
        %v2297 = vadd.f32 %v2281, %v988
        %v2298 = vadd.f32 %v2282, %v989
        %v2299 = vadd.f32 %v2283, %v990
        %v2300 = vld [vmem:[%s4] sm:$0xff]
        %v2301 = vld [vmem:[%s4 + $0x8] sm:$0xff]
        %v2302 = vld [vmem:[%s4 + $0x10] sm:$0xff]
        %v2303 = vld [vmem:[%s4 + $0x18] sm:$0xff]
        %v2304 = vld [vmem:[%s4 + $0x20] sm:$0xff]
        %v2305 = vld [vmem:[%s4 + $0x28] sm:$0xff]
        %v2306 = vld [vmem:[%s4 + $0x30] sm:$0xff]
        %v2307 = vld [vmem:[%s4 + $0x38] sm:$0xff]
        %2309 = vset.pattern.permute.xlu0 0
        %2310 = vperm.xlu0 %2309, %v2300
        %v2311 = vpop.permute.xlu0 %2310
        %2314 = vset.pattern.permute.xlu0 0
        %2315 = vperm.xlu0 %2314, %v2301
        %v2316 = vpop.permute.xlu0 %2315
        %2319 = vset.pattern.permute.xlu0 0
        %2320 = vperm.xlu0 %2319, %v2302
        %v2321 = vpop.permute.xlu0 %2320
        %2324 = vset.pattern.permute.xlu0 0
        %2325 = vperm.xlu0 %2324, %v2303
        %v2326 = vpop.permute.xlu0 %2325
        %2329 = vset.pattern.permute.xlu0 0
        %2330 = vperm.xlu0 %2329, %v2304
        %v2331 = vpop.permute.xlu0 %2330
        %2334 = vset.pattern.permute.xlu0 0
        %2335 = vperm.xlu0 %2334, %v2305
        %v2336 = vpop.permute.xlu0 %2335
        %2339 = vset.pattern.permute.xlu0 0
        %2340 = vperm.xlu0 %2339, %v2306
        %v2341 = vpop.permute.xlu0 %2340
        %2344 = vset.pattern.permute.xlu0 0
        %2345 = vperm.xlu0 %2344, %v2307
        %v2346 = vpop.permute.xlu0 %2345
        %v2348 = vadd.f32 %v2284, %v2311
        %v2349 = vadd.f32 %v2285, %v2316
        %v2350 = vadd.f32 %v2286, %v2321
        %v2351 = vadd.f32 %v2287, %v2326
        %v2352 = vadd.f32 %v2288, %v2331
        %v2353 = vadd.f32 %v2289, %v2336
        %v2354 = vadd.f32 %v2290, %v2341
        %v2355 = vadd.f32 %v2291, %v2346
        %v2356 = vadd.f32 %v2292, %v2311
        %v2357 = vadd.f32 %v2293, %v2316
        %v2358 = vadd.f32 %v2294, %v2321
        %v2359 = vadd.f32 %v2295, %v2326
        %v2360 = vadd.f32 %v2296, %v2331
        %v2361 = vadd.f32 %v2297, %v2336
        %v2362 = vadd.f32 %v2298, %v2341
        %v2363 = vadd.f32 %v2299, %v2346
        %v2364 = vpack.c.bf16 %v2348, %v2348
        %v2365 = vpack.c.bf16 %v2349, %v2349
        %v2366 = vpack.c.bf16 %v2350, %v2350
        %v2367 = vpack.c.bf16 %v2351, %v2351
        %v2368 = vpack.c.bf16 %v2352, %v2352
        %v2369 = vpack.c.bf16 %v2353, %v2353
        %v2370 = vpack.c.bf16 %v2354, %v2354
        %v2371 = vpack.c.bf16 %v2355, %v2355
        %v2372 = vpack.c.bf16 %v2356, %v2356
        %v2373 = vpack.c.bf16 %v2357, %v2357
        %v2374 = vpack.c.bf16 %v2358, %v2358
        %v2375 = vpack.c.bf16 %v2359, %v2359
        %v2376 = vpack.c.bf16 %v2360, %v2360
        %v2377 = vpack.c.bf16 %v2361, %v2361
        %v2378 = vpack.c.bf16 %v2362, %v2362
        %v2379 = vpack.c.bf16 %v2363, %v2363
        %2380 = vst [vmem:[%s345] sm:$0xf] %v2364
        %2381 = vst [vmem:[%s345 + $0x4] sm:$0xf] %v2365
        %2382 = vst [vmem:[%s345 + $0x8] sm:$0xf] %v2366
        %2383 = vst [vmem:[%s345 + $0xc] sm:$0xf] %v2367
        %2384 = vst [vmem:[%s345 + $0x10] sm:$0xf] %v2368
        %2385 = vst [vmem:[%s345 + $0x14] sm:$0xf] %v2369
        %2386 = vst [vmem:[%s345 + $0x18] sm:$0xf] %v2370
        %2387 = vst [vmem:[%s345 + $0x1c] sm:$0xf] %v2371
        %2388 = vst [vmem:[%s345 + $0x20] sm:$0xf] %v2372
        %2389 = vst [vmem:[%s345 + $0x24] sm:$0xf] %v2373
        %2390 = vst [vmem:[%s345 + $0x28] sm:$0xf] %v2374
        %2391 = vst [vmem:[%s345 + $0x2c] sm:$0xf] %v2375
        %2392 = vst [vmem:[%s345 + $0x30] sm:$0xf] %v2376
        %2393 = vst [vmem:[%s345 + $0x34] sm:$0xf] %v2377
        %2394 = vst [vmem:[%s345 + $0x38] sm:$0xf] %v2378
        %2395 = vst [vmem:[%s345 + $0x3c] sm:$0xf] %v2379
        %s2396 = sand.u32 %s154, 1
        %s2397 = scalar_lea.sflag [#allocation4], %s2396
        %s2398 = sand.u32 %s154, 1
        %s2399 = smul.addr %s2398, 64
        %s2400 = scalar_lea.vmem [#allocation10], %s2399
        // Predicated region
        $region57: #{tpu_custom_call.1} parent=39 // pred_check
          %p2401 = pneg %p164
        $region58: #{tpu_custom_call.1} parent=39 // pred_check_branch
          %2403 = sbr.rel (%p2401) target = $region60
        $region59: #{tpu_custom_call.1} parent=39 // pred_region
          %s2404 = smul.u32 2, %s26
          %2406 = vsyncadd %s2397, 0
          %s2407 = smul.addr %s2404, 8
          %s2408 = smul.addr %s2407, 4
          %s2409 = scalar_lea.hbm %s5, %s2408
          %s2410 = sshll.u32 %s2400, 4
          %s2411 = int_to_ptr.vmem [resolvable:$true] %s2410
          %s2412 = sshll.u32 %s2409, 4
          %s2413 = int_to_ptr.hbm [resolvable:$true] %s2412
          %2418 = dma.vmem_to_hbm [thread:$0]  %s2411, 1024, %s2413, %s2397, 64, 64, 4
        $region60: #{tpu_custom_call.1} parent=39 // pred_fallthru
          _
      $region40: #{tpu_custom_call.1} parent=5 // pred_fallthru
        _
      %p2419 = scmp.le.s32.totalorder 2, %s21
      // Predicated region
      $region61: #{tpu_custom_call.1} parent=5 // pred_check
        %p2420 = pneg %p2419
      $region62: #{tpu_custom_call.1} parent=5 // pred_check_branch
        %2422 = sbr.rel (%p2420) target = $region64
      $region63: #{tpu_custom_call.1} parent=5 // pred_region
        %s2423 = ssub.s32 %s21, 2
        // Predicated region
        $region65: #{tpu_custom_call.1} parent=63 // pred_check
          %p2424 = pneg %p170
        $region66: #{tpu_custom_call.1} parent=63 // pred_check_branch
          %2426 = sbr.rel (%p2424) target = $region68
        $region67: #{tpu_custom_call.1} parent=63 // pred_region
          %s2427 = sand.u32 %s155, 1
          %s2428 = scalar_lea.sflag [#allocation4], %s2427
          %s2429 = sand.u32 %s155, 1
          %s2430 = smul.addr %s2429, 64
          %s2431 = scalar_lea.vmem [#allocation10], %s2430
          %2433 = dma.done %s2428, 1024
        $region68: #{tpu_custom_call.1} parent=63 // pred_fallthru
          _
      $region64: #{tpu_custom_call.1} parent=5 // pred_fallthru
        _
    $region6: #{tpu_custom_call.1} parent=1 // loop_footer
      %s25 = sadd.s32 1, %s21
    $region7: #{tpu_custom_call.1} parent=1 // loop_footer_branch
      %20 = sbr.rel target = $region3
    $region8: #{tpu_custom_call.1} parent=1 // loop_exit
      _
    %2434 = vsyncpa [#allocation3], 1
    %s2435 = scalar_lea.sflag [#allocation3], 1
    %2436 = vsyncpa %s2435, 1
    %2437 = vsyncpa [#allocation6], 1
    %s2438 = scalar_lea.sflag [#allocation6], 1
    %2439 = vsyncpa %s2438, 1
    %2440 = vsyncpa [#allocation9], 1
    %2441 = vsyncpa [#allocation4], 1
    %s2442 = scalar_lea.sflag [#allocation4], 1
    %2443 = vsyncpa %s2442, 1

</llo_original>
